<compile_context>
chip_gen: v7x
topology: tpu7x:2x2x1
jax: 0.10.0
libtpu: 0.0.40
codegen_flags: <defaults>
</compile_context>

<pallas_src>
import math
from functools import partial

import jax
import jax.numpy as jnp
from jax import lax
from jax.experimental import pallas as pl
from jax.experimental.pallas import tpu as pltpu


# ----------------------------- in-kernel helpers -----------------------------------

def _softmax_last(x):
    m = jnp.max(x, axis=-1, keepdims=True)
    e = jnp.exp(x - m)
    denom = jnp.sum(e, axis=-1, keepdims=True)
    # denom >= 1 (max-subtracted), approx reciprocal is safe and runs on the EUP slot.
    return e * pl.reciprocal(denom, approx=True)


def _sym_attn(k1, q1, v1, k2, q2, v2, m1, m2, mxu_dtype):
    """SymmetricAttention, residual=1.  k/q/v already projected (scale folded into q).

    scores_mod1 = softmax(q2 @ k1^T);  out1 = scores_mod1 @ v1 + m2
    scores_mod2 = softmax(q1 @ k2^T);  out2 = scores_mod2 @ v2 + m1
    """
    dn = (((1,), (1,)), ((), ()))  # contract last dims of both operands == A @ B^T
    s1 = lax.dot_general(q2, k1, dn, preferred_element_type=jnp.float32)
    s2 = lax.dot_general(q1, k2, dn, preferred_element_type=jnp.float32)
    p1 = _softmax_last(s1).astype(mxu_dtype)
    p2 = _softmax_last(s2).astype(mxu_dtype)
    o1 = jnp.dot(p1, v1, preferred_element_type=jnp.float32) + m2
    o2 = jnp.dot(p2, v2, preferred_element_type=jnp.float32) + m1
    return o1, o2


# ----------------------------- fused kernel -----------------------------------------

def _fused_fuser_kernel(txt_ref, au_ref, vi_ref,
                        w_txt_ref, w_au_ref, w_vi_ref, w_qtav_ref,
                        o_ref, *, D, mxu_dtype):
    txt = txt_ref[0]                      # (L, D) fp32
    au = au_ref[0]
    vi = vi_ref[0]

    # One lane-dense packed projection matmul per input modality (bf16 MXU, fp32 acc).
    pt = jnp.dot(txt.astype(mxu_dtype), w_txt_ref[...],
                 preferred_element_type=jnp.float32).astype(mxu_dtype)   # (L, 8D)
    pa = jnp.dot(au.astype(mxu_dtype), w_au_ref[...],
                 preferred_element_type=jnp.float32).astype(mxu_dtype)   # (L, 6D)
    pv = jnp.dot(vi.astype(mxu_dtype), w_vi_ref[...],
                 preferred_element_type=jnp.float32).astype(mxu_dtype)   # (L, 6D)

    def blk(p, i):                        # static lane slice of one D-wide projection
        return p[:, i * D:(i + 1) * D]

    # ta, at = SymmetricAttention(txt, au)
    ta_o, at_o = _sym_attn(blk(pt, 0), blk(pt, 1), blk(pt, 2),
                           blk(pa, 0), blk(pa, 1), blk(pa, 2),
                           txt, au, mxu_dtype)
    # va, av = SymmetricAttention(vi, au)
    va_o, av_o = _sym_attn(blk(pv, 0), blk(pv, 1), blk(pv, 2),
                           blk(pa, 3), blk(pa, 4), blk(pa, 5),
                           vi, au, mxu_dtype)
    # tv, vt = SymmetricAttention(txt, vi)
    tv_o, vt_o = _sym_attn(blk(pt, 3), blk(pt, 4), blk(pt, 5),
                           blk(pv, 3), blk(pv, 4), blk(pv, 5),
                           txt, vi, mxu_dtype)

    av = va_o + av_o                      # fp32 adds (VPU, v5e-safe)
    tv = vt_o + tv_o
    ta = ta_o + at_o

    # tav = Attention(txt, queries=av): k/v from txt (packed slots 6/7), q from av.
    k_tav = blk(pt, 6)
    v_tav = blk(pt, 7)
    q_av = jnp.dot(av.astype(mxu_dtype), w_qtav_ref[...],
                   preferred_element_type=jnp.float32).astype(mxu_dtype)
    dn = (((1,), (1,)), ((), ()))
    s = lax.dot_general(q_av, k_tav, dn, preferred_element_type=jnp.float32)
    p = _softmax_last(s).astype(mxu_dtype)
    tav = jnp.dot(p, v_tav, preferred_element_type=jnp.float32)

    # Single lane-dense store of the fused slab (torch.cat order).
    fused = jnp.concatenate([txt, au, vi, ta, tv, av, tav], axis=-1)     # (L, 7D)
    o_ref[0] = fused.astype(o_ref.dtype)


# ----------------------------- wrapper ----------------------------------------------

def attention_masked_fuser(txt, au, vi, params):
    B, L, D = txt.shape
    mxu_dtype = params["w_txt"].dtype

    seq_spec = pl.BlockSpec((1, L, D), lambda b: (b, 0, 0))
    out_spec = pl.BlockSpec((1, L, 7 * D), lambda b: (b, 0, 0))
    # Weights: constant index_map -> loaded once, shared across all grid steps.
    w_txt_spec = pl.BlockSpec((D, 8 * D), lambda b: (0, 0))
    w_au_spec = pl.BlockSpec((D, 6 * D), lambda b: (0, 0))
    w_vi_spec = pl.BlockSpec((D, 6 * D), lambda b: (0, 0))
    w_q_spec = pl.BlockSpec((D, D), lambda b: (0, 0))

    kernel = partial(_fused_fuser_kernel, D=D, mxu_dtype=mxu_dtype)
    # NOTE: at large D (>=1024) on v7x (64 MiB VMEM), set
    # compiler_params vmem_limit_bytes explicitly and single-buffer the weights.
    return pl.pallas_call(
        kernel,
        grid=(B,),
        in_specs=[seq_spec, seq_spec, seq_spec,
                  w_txt_spec, w_au_spec, w_vi_spec, w_q_spec],
        out_specs=out_spec,
        out_shape=jax.ShapeDtypeStruct((B, L, 7 * D), txt.dtype),
        compiler_params=pltpu.CompilerParams(
            dimension_semantics=("parallel",)),
    )(txt, au, vi, params["w_txt"], params["w_au"], params["w_vi"], params["w_qtav"])


# ----------------------------- params (xavier-uniform, torch convention) ------------

def _xavier_uniform_t(key, out_dim, in_dim):
    a = math.sqrt(6.0 / (in_dim + out_dim))
    w = jax.random.uniform(key, (out_dim, in_dim), jnp.float32, -a, a)   # torch (out, in)
    return w.T                                                           # (in, out): x @ w == x @ weight.T


def init_params(key, proj_sz, mxu_dtype=jnp.bfloat16):
    D = proj_sz
    scale = 1.0 / math.sqrt(D)

    names = []
    for block in ("ta", "va", "tv"):
        for n in ("kx", "qx", "vx", "ky", "qy", "vy"):
            names.append(f"{block}.{n}")
    for n in ("k", "q", "v"):
        names.append(f"tav.{n}")

    ws = {}
    for name in names:
        key, sub = jax.random.split(key)
        ws[name] = _xavier_uniform_t(sub, D, D)

    # Fold 1/sqrt(dk) into every query projection (zero in-kernel cost).
    for qn in ("ta.qx", "ta.qy", "va.qx", "va.qy", "tv.qx", "tv.qy", "tav.q"):
        ws[qn] = ws[qn] * scale

    # Lane-dense packed weights, one matmul per input modality.
    w_txt = jnp.concatenate([ws["ta.kx"], ws["ta.qx"], ws["ta.vx"],
                             ws["tv.kx"], ws["tv.qx"], ws["tv.vx"],
                             ws["tav.k"], ws["tav.v"]], axis=1)          # (D, 8D)
    w_au = jnp.concatenate([ws["ta.ky"], ws["ta.qy"], ws["ta.vy"],
                            ws["va.ky"], ws["va.qy"], ws["va.vy"]], axis=1)  # (D, 6D)
    w_vi = jnp.concatenate([ws["va.kx"], ws["va.qx"], ws["va.vx"],
                            ws["tv.ky"], ws["tv.qy"], ws["tv.vy"]], axis=1)  # (D, 6D)
    w_qtav = ws["tav.q"]                                                 # (D, D)

    packed = dict(w_txt=w_txt.astype(mxu_dtype), w_au=w_au.astype(mxu_dtype),
                  w_vi=w_vi.astype(mxu_dtype), w_qtav=w_qtav.astype(mxu_dtype))
    return packed, ws


# ----------------------------- pure-JAX reference (fp32) ----------------------------

def _reference_forward(txt, au, vi, ws):
    def sym(m1, m2, pre):
        k1 = m1 @ ws[pre + ".kx"]; q1 = m1 @ ws[pre + ".qx"]; v1 = m1 @ ws[pre + ".vx"]
        k2 = m2 @ ws[pre + ".ky"]; q2 = m2 @ ws[pre + ".qy"]; v2 = m2 @ ws[pre + ".vy"]
        s1 = jnp.einsum("bld,bmd->blm", q2, k1)      # scale already folded into q
        s2 = jnp.einsum("bld,bmd->blm", q1, k2)
        p1 = jax.nn.softmax(s1, axis=-1)
        p2 = jax.nn.softmax(s2, axis=-1)
        o1 = jnp.einsum("blm,bmd->bld", p1, v1) + m2
        o2 = jnp.einsum("blm,bmd->bld", p2, v2) + m1
        return o1, o2

    ta_o, at_o = sym(txt, au, "ta")
    va_o, av_o = sym(vi, au, "va")
    tv_o, vt_o = sym(txt, vi, "tv")
    av = va_o + av_o
    tv = vt_o + tv_o
    ta = ta_o + at_o

    k = txt @ ws["tav.k"]; v = txt @ ws["tav.v"]; q = av @ ws["tav.q"]
    s = jnp.einsum("bld,bmd->blm", q, k)
    p = jax.nn.softmax(s, axis=-1)
    tav = jnp.einsum("blm,bmd->bld", p, v)

    return jnp.concatenate([txt, au, vi, ta, tv, av, tav], axis=-1)


# ----------------------------- main --------------------------------------------------

if __name__ == "__main__":
    B, L, D = 2, 8, 32          # batch, seq, proj_sz
    key = jax.random.PRNGKey(0)
    k_txt, k_au, k_vi, k_par = jax.random.split(key, 4)

    txt = jax.random.normal(k_txt, (B, L, D), jnp.float32)
    au = jax.random.normal(k_au, (B, L, D), jnp.float32)
    vi = jax.random.normal(k_vi, (B, L, D), jnp.float32)

    params, raw_ws = init_params(k_par, D)

    fused = attention_masked_fuser(txt, au, vi, params)
    fused = jax.block_until_ready(fused)
    assert fused.shape == (B, L, 7 * D), fused.shape

    ref = _reference_forward(txt, au, vi, raw_ws)
    assert bool(jnp.all(jnp.isfinite(fused)))
    # bf16 MXU inputs + approx reciprocal vs fp32 reference -> loose tolerance.
    assert bool(jnp.allclose(fused, ref, rtol=5e-2, atol=5e-2)), (
        float(jnp.max(jnp.abs(fused - ref))))

    print("KERNEL_OK")
</pallas_src>

<mosaic_0001>
module attributes {stable_mosaic.version = 11 : i64} {
  func.func @_fused_fuser_kernel(%arg0: i32, %arg1: memref<1x8x32xf32, #tpu.memory_space<vmem>>, %arg2: memref<1x8x32xf32, #tpu.memory_space<vmem>>, %arg3: memref<1x8x32xf32, #tpu.memory_space<vmem>>, %arg4: memref<32x256xbf16, #tpu.memory_space<vmem>>, %arg5: memref<32x192xbf16, #tpu.memory_space<vmem>>, %arg6: memref<32x192xbf16, #tpu.memory_space<vmem>>, %arg7: memref<32x32xbf16, #tpu.memory_space<vmem>>, %arg8: memref<1x8x224xf32, #tpu.memory_space<vmem>>) attributes {dimension_semantics = [#tpu.dimension_semantics<parallel>], iteration_bounds = array<i64: 2>, scalar_prefetch = 0 : i64, scratch_operands = 0 : i64, tpu.core_type = #tpu.core_type<tc>, window_params = [{transform_indices = @transform_0, window_bounds = array<i64: 1, 8, 32>}, {transform_indices = @transform_1, window_bounds = array<i64: 1, 8, 32>}, {transform_indices = @transform_2, window_bounds = array<i64: 1, 8, 32>}, {pipeline_mode = #tpu.pipeline_mode<synchronous>, transform_indices = @transform_3, window_bounds = array<i64: 32, 256>}, {pipeline_mode = #tpu.pipeline_mode<synchronous>, transform_indices = @transform_4, window_bounds = array<i64: 32, 192>}, {pipeline_mode = #tpu.pipeline_mode<synchronous>, transform_indices = @transform_5, window_bounds = array<i64: 32, 192>}, {pipeline_mode = #tpu.pipeline_mode<synchronous>, transform_indices = @transform_6, window_bounds = array<i64: 32, 32>}, {transform_indices = @transform_7, window_bounds = array<i64: 1, 8, 224>}]} {
    %c0 = arith.constant 0 : index
    %c0_0 = arith.constant 0 : index
    %c0_1 = arith.constant 0 : index
    %0 = vector.load %arg1[%c0, %c0_0, %c0_1] : memref<1x8x32xf32, #tpu.memory_space<vmem>>, vector<1x8x32xf32>
    %1 = vector.shape_cast %0 : vector<1x8x32xf32> to vector<8x32xf32>
    %c0_2 = arith.constant 0 : index
    %c0_3 = arith.constant 0 : index
    %c0_4 = arith.constant 0 : index
    %2 = vector.load %arg2[%c0_2, %c0_3, %c0_4] : memref<1x8x32xf32, #tpu.memory_space<vmem>>, vector<1x8x32xf32>
    %3 = vector.shape_cast %2 : vector<1x8x32xf32> to vector<8x32xf32>
    %c0_5 = arith.constant 0 : index
    %c0_6 = arith.constant 0 : index
    %c0_7 = arith.constant 0 : index
    %4 = vector.load %arg3[%c0_5, %c0_6, %c0_7] : memref<1x8x32xf32, #tpu.memory_space<vmem>>, vector<1x8x32xf32>
    %5 = vector.shape_cast %4 : vector<1x8x32xf32> to vector<8x32xf32>
    %6 = arith.truncf %1 : vector<8x32xf32> to vector<8x32xbf16>
    %c0_8 = arith.constant 0 : index
    %c0_9 = arith.constant 0 : index
    %7 = vector.load %arg4[%c0_8, %c0_9] : memref<32x256xbf16, #tpu.memory_space<vmem>>, vector<32x256xbf16>
    %cst = arith.constant dense<0.000000e+00> : vector<8x256xf32>
    %8 = tpu.matmul %6, %7, %cst {dimension_numbers = #tpu.dot_dimension_numbers<[1], [0], [0], [1], [0, 0, 1, 1], [], []>} : vector<8x32xbf16>, vector<32x256xbf16>, vector<8x256xf32> -> vector<8x256xf32>
    %9 = arith.truncf %8 : vector<8x256xf32> to vector<8x256xbf16>
    %10 = arith.truncf %3 : vector<8x32xf32> to vector<8x32xbf16>
    %c0_10 = arith.constant 0 : index
    %c0_11 = arith.constant 0 : index
    %11 = vector.load %arg5[%c0_10, %c0_11] : memref<32x192xbf16, #tpu.memory_space<vmem>>, vector<32x192xbf16>
    %cst_12 = arith.constant dense<0.000000e+00> : vector<8x192xf32>
    %12 = tpu.matmul %10, %11, %cst_12 {dimension_numbers = #tpu.dot_dimension_numbers<[1], [0], [0], [1], [0, 0, 1, 1], [], []>} : vector<8x32xbf16>, vector<32x192xbf16>, vector<8x192xf32> -> vector<8x192xf32>
    %13 = arith.truncf %12 : vector<8x192xf32> to vector<8x192xbf16>
    %14 = arith.truncf %5 : vector<8x32xf32> to vector<8x32xbf16>
    %c0_13 = arith.constant 0 : index
    %c0_14 = arith.constant 0 : index
    %15 = vector.load %arg6[%c0_13, %c0_14] : memref<32x192xbf16, #tpu.memory_space<vmem>>, vector<32x192xbf16>
    %cst_15 = arith.constant dense<0.000000e+00> : vector<8x192xf32>
    %16 = tpu.matmul %14, %15, %cst_15 {dimension_numbers = #tpu.dot_dimension_numbers<[1], [0], [0], [1], [0, 0, 1, 1], [], []>} : vector<8x32xbf16>, vector<32x192xbf16>, vector<8x192xf32> -> vector<8x192xf32>
    %17 = arith.truncf %16 : vector<8x192xf32> to vector<8x192xbf16>
    %18 = vector.extract_strided_slice %9 {offsets = [0, 0], sizes = [8, 32], strides = [1, 1]} : vector<8x256xbf16> to vector<8x32xbf16>
    %19 = vector.extract_strided_slice %9 {offsets = [0, 32], sizes = [8, 32], strides = [1, 1]} : vector<8x256xbf16> to vector<8x32xbf16>
    %20 = vector.extract_strided_slice %9 {offsets = [0, 64], sizes = [8, 32], strides = [1, 1]} : vector<8x256xbf16> to vector<8x32xbf16>
    %21 = vector.extract_strided_slice %13 {offsets = [0, 0], sizes = [8, 32], strides = [1, 1]} : vector<8x192xbf16> to vector<8x32xbf16>
    %22 = vector.extract_strided_slice %13 {offsets = [0, 32], sizes = [8, 32], strides = [1, 1]} : vector<8x192xbf16> to vector<8x32xbf16>
    %23 = vector.extract_strided_slice %13 {offsets = [0, 64], sizes = [8, 32], strides = [1, 1]} : vector<8x192xbf16> to vector<8x32xbf16>
    %cst_16 = arith.constant dense<0.000000e+00> : vector<8x8xf32>
    %24 = tpu.matmul %22, %18, %cst_16 {dimension_numbers = #tpu.dot_dimension_numbers<[1], [1], [0], [0], [0, 0, 1, 0], [], []>} : vector<8x32xbf16>, vector<8x32xbf16>, vector<8x8xf32> -> vector<8x8xf32>
    %cst_17 = arith.constant dense<0.000000e+00> : vector<8x8xf32>
    %25 = tpu.matmul %19, %21, %cst_17 {dimension_numbers = #tpu.dot_dimension_numbers<[1], [1], [0], [0], [0, 0, 1, 0], [], []>} : vector<8x32xbf16>, vector<8x32xbf16>, vector<8x8xf32> -> vector<8x8xf32>
    %cst_18 = arith.constant dense<0xFF800000> : vector<8xf32>
    %26 = vector.multi_reduction <maximumf>, %24, %cst_18 [1] : vector<8x8xf32> to vector<8xf32>
    %27 = vector.shape_cast %26 : vector<8xf32> to vector<8x1xf32>
    %28 = vector.broadcast %27 : vector<8x1xf32> to vector<8x8xf32>
    %29 = arith.subf %24, %28 : vector<8x8xf32>
    %30 = math.exp %29 : vector<8x8xf32>
    %cst_19 = arith.constant dense<0.000000e+00> : vector<8xf32>
    %31 = vector.multi_reduction <add>, %30, %cst_19 [1] : vector<8x8xf32> to vector<8xf32>
    %32 = vector.shape_cast %31 : vector<8xf32> to vector<8x1xf32>
    %33 = tpu.reciprocal %32 {approx = true} : vector<8x1xf32> -> vector<8x1xf32>
    %34 = vector.broadcast %33 : vector<8x1xf32> to vector<8x8xf32>
    %35 = arith.mulf %30, %34 : vector<8x8xf32>
    %36 = arith.truncf %35 : vector<8x8xf32> to vector<8x8xbf16>
    %cst_20 = arith.constant dense<0xFF800000> : vector<8xf32>
    %37 = vector.multi_reduction <maximumf>, %25, %cst_20 [1] : vector<8x8xf32> to vector<8xf32>
    %38 = vector.shape_cast %37 : vector<8xf32> to vector<8x1xf32>
    %39 = vector.broadcast %38 : vector<8x1xf32> to vector<8x8xf32>
    %40 = arith.subf %25, %39 : vector<8x8xf32>
    %41 = math.exp %40 : vector<8x8xf32>
    %cst_21 = arith.constant dense<0.000000e+00> : vector<8xf32>
    %42 = vector.multi_reduction <add>, %41, %cst_21 [1] : vector<8x8xf32> to vector<8xf32>
    %43 = vector.shape_cast %42 : vector<8xf32> to vector<8x1xf32>
    %44 = tpu.reciprocal %43 {approx = true} : vector<8x1xf32> -> vector<8x1xf32>
    %45 = vector.broadcast %44 : vector<8x1xf32> to vector<8x8xf32>
    %46 = arith.mulf %41, %45 : vector<8x8xf32>
    %47 = arith.truncf %46 : vector<8x8xf32> to vector<8x8xbf16>
    %cst_22 = arith.constant dense<0.000000e+00> : vector<8x32xf32>
    %48 = tpu.matmul %36, %20, %cst_22 {dimension_numbers = #tpu.dot_dimension_numbers<[1], [0], [0], [1], [0, 0, 1, 1], [], []>} : vector<8x8xbf16>, vector<8x32xbf16>, vector<8x32xf32> -> vector<8x32xf32>
    %49 = arith.addf %48, %3 : vector<8x32xf32>
    %cst_23 = arith.constant dense<0.000000e+00> : vector<8x32xf32>
    %50 = tpu.matmul %47, %23, %cst_23 {dimension_numbers = #tpu.dot_dimension_numbers<[1], [0], [0], [1], [0, 0, 1, 1], [], []>} : vector<8x8xbf16>, vector<8x32xbf16>, vector<8x32xf32> -> vector<8x32xf32>
    %51 = arith.addf %50, %1 : vector<8x32xf32>
    %52 = vector.extract_strided_slice %17 {offsets = [0, 0], sizes = [8, 32], strides = [1, 1]} : vector<8x192xbf16> to vector<8x32xbf16>
    %53 = vector.extract_strided_slice %17 {offsets = [0, 32], sizes = [8, 32], strides = [1, 1]} : vector<8x192xbf16> to vector<8x32xbf16>
    %54 = vector.extract_strided_slice %17 {offsets = [0, 64], sizes = [8, 32], strides = [1, 1]} : vector<8x192xbf16> to vector<8x32xbf16>
    %55 = vector.extract_strided_slice %13 {offsets = [0, 96], sizes = [8, 32], strides = [1, 1]} : vector<8x192xbf16> to vector<8x32xbf16>
    %56 = vector.extract_strided_slice %13 {offsets = [0, 128], sizes = [8, 32], strides = [1, 1]} : vector<8x192xbf16> to vector<8x32xbf16>
    %57 = vector.extract_strided_slice %13 {offsets = [0, 160], sizes = [8, 32], strides = [1, 1]} : vector<8x192xbf16> to vector<8x32xbf16>
    %cst_24 = arith.constant dense<0.000000e+00> : vector<8x8xf32>
    %58 = tpu.matmul %56, %52, %cst_24 {dimension_numbers = #tpu.dot_dimension_numbers<[1], [1], [0], [0], [0, 0, 1, 0], [], []>} : vector<8x32xbf16>, vector<8x32xbf16>, vector<8x8xf32> -> vector<8x8xf32>
    %cst_25 = arith.constant dense<0.000000e+00> : vector<8x8xf32>
    %59 = tpu.matmul %53, %55, %cst_25 {dimension_numbers = #tpu.dot_dimension_numbers<[1], [1], [0], [0], [0, 0, 1, 0], [], []>} : vector<8x32xbf16>, vector<8x32xbf16>, vector<8x8xf32> -> vector<8x8xf32>
    %cst_26 = arith.constant dense<0xFF800000> : vector<8xf32>
    %60 = vector.multi_reduction <maximumf>, %58, %cst_26 [1] : vector<8x8xf32> to vector<8xf32>
    %61 = vector.shape_cast %60 : vector<8xf32> to vector<8x1xf32>
    %62 = vector.broadcast %61 : vector<8x1xf32> to vector<8x8xf32>
    %63 = arith.subf %58, %62 : vector<8x8xf32>
    %64 = math.exp %63 : vector<8x8xf32>
    %cst_27 = arith.constant dense<0.000000e+00> : vector<8xf32>
    %65 = vector.multi_reduction <add>, %64, %cst_27 [1] : vector<8x8xf32> to vector<8xf32>
    %66 = vector.shape_cast %65 : vector<8xf32> to vector<8x1xf32>
    %67 = tpu.reciprocal %66 {approx = true} : vector<8x1xf32> -> vector<8x1xf32>
    %68 = vector.broadcast %67 : vector<8x1xf32> to vector<8x8xf32>
    %69 = arith.mulf %64, %68 : vector<8x8xf32>
    %70 = arith.truncf %69 : vector<8x8xf32> to vector<8x8xbf16>
    %cst_28 = arith.constant dense<0xFF800000> : vector<8xf32>
    %71 = vector.multi_reduction <maximumf>, %59, %cst_28 [1] : vector<8x8xf32> to vector<8xf32>
    %72 = vector.shape_cast %71 : vector<8xf32> to vector<8x1xf32>
    %73 = vector.broadcast %72 : vector<8x1xf32> to vector<8x8xf32>
    %74 = arith.subf %59, %73 : vector<8x8xf32>
    %75 = math.exp %74 : vector<8x8xf32>
    %cst_29 = arith.constant dense<0.000000e+00> : vector<8xf32>
    %76 = vector.multi_reduction <add>, %75, %cst_29 [1] : vector<8x8xf32> to vector<8xf32>
    %77 = vector.shape_cast %76 : vector<8xf32> to vector<8x1xf32>
    %78 = tpu.reciprocal %77 {approx = true} : vector<8x1xf32> -> vector<8x1xf32>
    %79 = vector.broadcast %78 : vector<8x1xf32> to vector<8x8xf32>
    %80 = arith.mulf %75, %79 : vector<8x8xf32>
    %81 = arith.truncf %80 : vector<8x8xf32> to vector<8x8xbf16>
    %cst_30 = arith.constant dense<0.000000e+00> : vector<8x32xf32>
    %82 = tpu.matmul %70, %54, %cst_30 {dimension_numbers = #tpu.dot_dimension_numbers<[1], [0], [0], [1], [0, 0, 1, 1], [], []>} : vector<8x8xbf16>, vector<8x32xbf16>, vector<8x32xf32> -> vector<8x32xf32>
    %83 = arith.addf %82, %3 : vector<8x32xf32>
    %cst_31 = arith.constant dense<0.000000e+00> : vector<8x32xf32>
    %84 = tpu.matmul %81, %57, %cst_31 {dimension_numbers = #tpu.dot_dimension_numbers<[1], [0], [0], [1], [0, 0, 1, 1], [], []>} : vector<8x8xbf16>, vector<8x32xbf16>, vector<8x32xf32> -> vector<8x32xf32>
    %85 = arith.addf %84, %5 : vector<8x32xf32>
    %86 = vector.extract_strided_slice %9 {offsets = [0, 96], sizes = [8, 32], strides = [1, 1]} : vector<8x256xbf16> to vector<8x32xbf16>
    %87 = vector.extract_strided_slice %9 {offsets = [0, 128], sizes = [8, 32], strides = [1, 1]} : vector<8x256xbf16> to vector<8x32xbf16>
    %88 = vector.extract_strided_slice %9 {offsets = [0, 160], sizes = [8, 32], strides = [1, 1]} : vector<8x256xbf16> to vector<8x32xbf16>
    %89 = vector.extract_strided_slice %17 {offsets = [0, 96], sizes = [8, 32], strides = [1, 1]} : vector<8x192xbf16> to vector<8x32xbf16>
    %90 = vector.extract_strided_slice %17 {offsets = [0, 128], sizes = [8, 32], strides = [1, 1]} : vector<8x192xbf16> to vector<8x32xbf16>
    %91 = vector.extract_strided_slice %17 {offsets = [0, 160], sizes = [8, 32], strides = [1, 1]} : vector<8x192xbf16> to vector<8x32xbf16>
    %cst_32 = arith.constant dense<0.000000e+00> : vector<8x8xf32>
    %92 = tpu.matmul %90, %86, %cst_32 {dimension_numbers = #tpu.dot_dimension_numbers<[1], [1], [0], [0], [0, 0, 1, 0], [], []>} : vector<8x32xbf16>, vector<8x32xbf16>, vector<8x8xf32> -> vector<8x8xf32>
    %cst_33 = arith.constant dense<0.000000e+00> : vector<8x8xf32>
    %93 = tpu.matmul %87, %89, %cst_33 {dimension_numbers = #tpu.dot_dimension_numbers<[1], [1], [0], [0], [0, 0, 1, 0], [], []>} : vector<8x32xbf16>, vector<8x32xbf16>, vector<8x8xf32> -> vector<8x8xf32>
    %cst_34 = arith.constant dense<0xFF800000> : vector<8xf32>
    %94 = vector.multi_reduction <maximumf>, %92, %cst_34 [1] : vector<8x8xf32> to vector<8xf32>
    %95 = vector.shape_cast %94 : vector<8xf32> to vector<8x1xf32>
    %96 = vector.broadcast %95 : vector<8x1xf32> to vector<8x8xf32>
    %97 = arith.subf %92, %96 : vector<8x8xf32>
    %98 = math.exp %97 : vector<8x8xf32>
    %cst_35 = arith.constant dense<0.000000e+00> : vector<8xf32>
    %99 = vector.multi_reduction <add>, %98, %cst_35 [1] : vector<8x8xf32> to vector<8xf32>
    %100 = vector.shape_cast %99 : vector<8xf32> to vector<8x1xf32>
    %101 = tpu.reciprocal %100 {approx = true} : vector<8x1xf32> -> vector<8x1xf32>
    %102 = vector.broadcast %101 : vector<8x1xf32> to vector<8x8xf32>
    %103 = arith.mulf %98, %102 : vector<8x8xf32>
    %104 = arith.truncf %103 : vector<8x8xf32> to vector<8x8xbf16>
    %cst_36 = arith.constant dense<0xFF800000> : vector<8xf32>
    %105 = vector.multi_reduction <maximumf>, %93, %cst_36 [1] : vector<8x8xf32> to vector<8xf32>
    %106 = vector.shape_cast %105 : vector<8xf32> to vector<8x1xf32>
    %107 = vector.broadcast %106 : vector<8x1xf32> to vector<8x8xf32>
    %108 = arith.subf %93, %107 : vector<8x8xf32>
    %109 = math.exp %108 : vector<8x8xf32>
    %cst_37 = arith.constant dense<0.000000e+00> : vector<8xf32>
    %110 = vector.multi_reduction <add>, %109, %cst_37 [1] : vector<8x8xf32> to vector<8xf32>
    %111 = vector.shape_cast %110 : vector<8xf32> to vector<8x1xf32>
    %112 = tpu.reciprocal %111 {approx = true} : vector<8x1xf32> -> vector<8x1xf32>
    %113 = vector.broadcast %112 : vector<8x1xf32> to vector<8x8xf32>
    %114 = arith.mulf %109, %113 : vector<8x8xf32>
    %115 = arith.truncf %114 : vector<8x8xf32> to vector<8x8xbf16>
    %cst_38 = arith.constant dense<0.000000e+00> : vector<8x32xf32>
    %116 = tpu.matmul %104, %88, %cst_38 {dimension_numbers = #tpu.dot_dimension_numbers<[1], [0], [0], [1], [0, 0, 1, 1], [], []>} : vector<8x8xbf16>, vector<8x32xbf16>, vector<8x32xf32> -> vector<8x32xf32>
    %117 = arith.addf %116, %5 : vector<8x32xf32>
    %cst_39 = arith.constant dense<0.000000e+00> : vector<8x32xf32>
    %118 = tpu.matmul %115, %91, %cst_39 {dimension_numbers = #tpu.dot_dimension_numbers<[1], [0], [0], [1], [0, 0, 1, 1], [], []>} : vector<8x8xbf16>, vector<8x32xbf16>, vector<8x32xf32> -> vector<8x32xf32>
    %119 = arith.addf %118, %1 : vector<8x32xf32>
    %120 = arith.addf %83, %85 : vector<8x32xf32>
    %121 = arith.addf %119, %117 : vector<8x32xf32>
    %122 = arith.addf %49, %51 : vector<8x32xf32>
    %123 = vector.extract_strided_slice %9 {offsets = [0, 192], sizes = [8, 32], strides = [1, 1]} : vector<8x256xbf16> to vector<8x32xbf16>
    %124 = vector.extract_strided_slice %9 {offsets = [0, 224], sizes = [8, 32], strides = [1, 1]} : vector<8x256xbf16> to vector<8x32xbf16>
    %125 = arith.truncf %120 : vector<8x32xf32> to vector<8x32xbf16>
    %c0_40 = arith.constant 0 : index
    %c0_41 = arith.constant 0 : index
    %126 = vector.load %arg7[%c0_40, %c0_41] : memref<32x32xbf16, #tpu.memory_space<vmem>>, vector<32x32xbf16>
    %cst_42 = arith.constant dense<0.000000e+00> : vector<8x32xf32>
    %127 = tpu.matmul %125, %126, %cst_42 {dimension_numbers = #tpu.dot_dimension_numbers<[1], [0], [0], [1], [0, 0, 1, 1], [], []>} : vector<8x32xbf16>, vector<32x32xbf16>, vector<8x32xf32> -> vector<8x32xf32>
    %128 = arith.truncf %127 : vector<8x32xf32> to vector<8x32xbf16>
    %cst_43 = arith.constant dense<0.000000e+00> : vector<8x8xf32>
    %129 = tpu.matmul %128, %123, %cst_43 {dimension_numbers = #tpu.dot_dimension_numbers<[1], [1], [0], [0], [0, 0, 1, 0], [], []>} : vector<8x32xbf16>, vector<8x32xbf16>, vector<8x8xf32> -> vector<8x8xf32>
    %cst_44 = arith.constant dense<0xFF800000> : vector<8xf32>
    %130 = vector.multi_reduction <maximumf>, %129, %cst_44 [1] : vector<8x8xf32> to vector<8xf32>
    %131 = vector.shape_cast %130 : vector<8xf32> to vector<8x1xf32>
    %132 = vector.broadcast %131 : vector<8x1xf32> to vector<8x8xf32>
    %133 = arith.subf %129, %132 : vector<8x8xf32>
    %134 = math.exp %133 : vector<8x8xf32>
    %cst_45 = arith.constant dense<0.000000e+00> : vector<8xf32>
    %135 = vector.multi_reduction <add>, %134, %cst_45 [1] : vector<8x8xf32> to vector<8xf32>
    %136 = vector.shape_cast %135 : vector<8xf32> to vector<8x1xf32>
    %137 = tpu.reciprocal %136 {approx = true} : vector<8x1xf32> -> vector<8x1xf32>
    %138 = vector.broadcast %137 : vector<8x1xf32> to vector<8x8xf32>
    %139 = arith.mulf %134, %138 : vector<8x8xf32>
    %140 = arith.truncf %139 : vector<8x8xf32> to vector<8x8xbf16>
    %cst_46 = arith.constant dense<0.000000e+00> : vector<8x32xf32>
    %141 = tpu.matmul %140, %124, %cst_46 {dimension_numbers = #tpu.dot_dimension_numbers<[1], [0], [0], [1], [0, 0, 1, 1], [], []>} : vector<8x8xbf16>, vector<8x32xbf16>, vector<8x32xf32> -> vector<8x32xf32>
    %142 = tpu.concatenate %1, %3, %5, %122, %121, %120, %141 in 1 : vector<8x32xf32>, vector<8x32xf32>, vector<8x32xf32>, vector<8x32xf32>, vector<8x32xf32>, vector<8x32xf32>, vector<8x32xf32> -> vector<8x224xf32>
    %c0_47 = arith.constant 0 : index
    %c0_48 = arith.constant 0 : index
    %c0_49 = arith.constant 0 : index
    %143 = vector.load %arg8[%c0_47, %c0_48, %c0_49] : memref<1x8x224xf32, #tpu.memory_space<vmem>>, vector<1x8x224xf32>
    %144 = vector.shape_cast %143 : vector<1x8x224xf32> to vector<8x224xf32>
    %145 = vector.shape_cast %142 : vector<8x224xf32> to vector<1x8x224xf32>
    tpu.vector_store %arg8[%c0_47, %c0_48, %c0_49], %145 {strides = array<i32>} : memref<1x8x224xf32, #tpu.memory_space<vmem>>, vector<1x8x224xf32>,
    return
  }
  func.func @transform_0(%arg0: i32) -> (i32, i32, i32) {
    %c0_i32 = arith.constant 0 : i32
    %c0_i32_0 = arith.constant 0 : i32
    %c0_i32_1 = arith.constant 0 : i32
    return %arg0, %c0_i32, %c0_i32_0 : i32, i32, i32
  }
  func.func @transform_1(%arg0: i32) -> (i32, i32, i32) {
    %c0_i32 = arith.constant 0 : i32
    %c0_i32_0 = arith.constant 0 : i32
    %c0_i32_1 = arith.constant 0 : i32
    return %arg0, %c0_i32, %c0_i32_0 : i32, i32, i32
  }
  func.func @transform_2(%arg0: i32) -> (i32, i32, i32) {
    %c0_i32 = arith.constant 0 : i32
    %c0_i32_0 = arith.constant 0 : i32
    %c0_i32_1 = arith.constant 0 : i32
    return %arg0, %c0_i32, %c0_i32_0 : i32, i32, i32
  }
  func.func @transform_3(%arg0: i32) -> (i32, i32) {
    %c0_i32 = arith.constant 0 : i32
    %c0_i32_0 = arith.constant 0 : i32
    %c0_i32_1 = arith.constant 0 : i32
    return %c0_i32, %c0_i32_0 : i32, i32
  }
  func.func @transform_4(%arg0: i32) -> (i32, i32) {
    %c0_i32 = arith.constant 0 : i32
    %c0_i32_0 = arith.constant 0 : i32
    %c0_i32_1 = arith.constant 0 : i32
    return %c0_i32, %c0_i32_0 : i32, i32
  }
  func.func @transform_5(%arg0: i32) -> (i32, i32) {
    %c0_i32 = arith.constant 0 : i32
    %c0_i32_0 = arith.constant 0 : i32
    %c0_i32_1 = arith.constant 0 : i32
    return %c0_i32, %c0_i32_0 : i32, i32
  }
  func.func @transform_6(%arg0: i32) -> (i32, i32) {
    %c0_i32 = arith.constant 0 : i32
    %c0_i32_0 = arith.constant 0 : i32
    %c0_i32_1 = arith.constant 0 : i32
    return %c0_i32, %c0_i32_0 : i32, i32
  }
  func.func @transform_7(%arg0: i32) -> (i32, i32, i32) {
    %c0_i32 = arith.constant 0 : i32
    %c0_i32_0 = arith.constant 0 : i32
    %c0_i32_1 = arith.constant 0 : i32
    return %arg0, %c0_i32, %c0_i32_0 : i32, i32, i32
  }
}

</mosaic_0001>

<llo_original>
// kernel: tpu_custom_call.1
$region0: #{tpu_custom_call.1}
  #allocation0 [shape = 'u32[]', space=smem, size = 0x4, offset = 0x4, fixed_abs, tag = 'smem constant byte address 0x4 - core index']
  #allocation1 [shape = 'u32[144,128]{1,0:T(1,128)}', space=vmem, size = 0x12000, scoped, tag = 'internal scratch']
  %s0 = inlined_call_operand.hbm [shape: f32[2,8,32], index: 0, kind: input, shape index: {}]
  %s1 = inlined_call_operand.hbm [shape: f32[2,8,32], index: 1, kind: input, shape index: {}]
  %s2 = inlined_call_operand.hbm [shape: f32[2,8,32], index: 2, kind: input, shape index: {}]
  %s3 = inlined_call_operand.hbm [shape: bf16[32,256], index: 3, kind: input, shape index: {}]
  %s4 = inlined_call_operand.hbm [shape: bf16[32,192], index: 4, kind: input, shape index: {}]
  %s5 = inlined_call_operand.hbm [shape: bf16[32,192], index: 5, kind: input, shape index: {}]
  %s6 = inlined_call_operand.vmem [shape: bf16[32,32], index: 6, kind: input, shape index: {}]
  %s7 = inlined_call_operand.hbm [shape: f32[2,8,224], index: 7, kind: output, shape index: {}]
  %s8 = sld [smem:[#allocation0]]
  $region85: #{tpu_custom_call.1} parent=0
    _
  %s10 = ssub.s32 1, %s8
  %s11 = scalar_select 0, %s10, %s8
  $region1: #{tpu_custom_call.1} parent=0
    #allocation2 [shape = 'u8[8192]{0}', space=vmem, size = 0x2000, scoped, tag = 'input window, operand 0']
    #allocation3 [shape = 's32[2]{0}', space=sflag, size = 0x8, scoped, tag = 'scoped memory for tpu_custom_call.1']
    #allocation4 [shape = 's32[2]{0}', space=sflag, size = 0x8, scoped, tag = 'scoped memory for tpu_custom_call.1']
    #allocation5 [shape = 'u8[8192]{0}', space=vmem, size = 0x2000, scoped, tag = 'input window, operand 1']
    #allocation6 [shape = 's32[2]{0}', space=sflag, size = 0x8, scoped, tag = 'scoped memory for tpu_custom_call.1']
    #allocation7 [shape = 'u8[8192]{0}', space=vmem, size = 0x2000, scoped, tag = 'input window, operand 2']
    #allocation8 [shape = 'u8[16384]{0}', space=vmem, size = 0x4000, scoped, tag = 'input window, operand 3, single buffered']
    #allocation9 [shape = 's32[1]{0}', space=sflag, size = 0x4, scoped, tag = 'scoped memory for tpu_custom_call.1']
    #allocation10 [shape = 'u8[16384]{0}', space=vmem, size = 0x4000, scoped, tag = 'input window, operand 4, single buffered']
    #allocation11 [shape = 'u8[16384]{0}', space=vmem, size = 0x4000, scoped, tag = 'input window, operand 5, single buffered']
    #allocation12 [shape = 's32[1]{0}', space=sflag, size = 0x4, scoped, tag = 'scoped memory for tpu_custom_call.1']
    #allocation13 [shape = 'u8[16384]{0}', space=vmem, size = 0x4000, scoped, tag = 'output window, operand 0']
    %12 = vsyncpa [#allocation3], 0
    %s13 = scalar_lea.sflag [#allocation3], 1
    %14 = vsyncpa %s13, 0
    %15 = vsyncpa [#allocation6], 0
    %s16 = scalar_lea.sflag [#allocation6], 1
    %17 = vsyncpa %s16, 0
    %18 = vsyncpa [#allocation9], 0
    %19 = vsyncpa [#allocation12], 0
    %20 = vsyncpa [#allocation4], 0
    %s21 = scalar_lea.sflag [#allocation4], 1
    %22 = vsyncpa %s21, 0
    loop: start=0, step=1, limit=4
    $region2: #{tpu_custom_call.1} parent=1 // loop_pre_header
      _
    $region3: #{tpu_custom_call.1} parent=1 // loop_header
      %s24 = sphi 0, %s28
      %p25 = scmp.ge.s32.totalorder %s24, 4
      %s34 = sphi 0, %s36
      %s37 = sphi 0, %s34
      %s38 = sphi 0, %s37
      %s54 = sphi 0, %s38
      %s60 = sphi 0, %s62
      %s63 = sphi 0, %s60
      %s64 = sphi 0, %s63
      %s80 = sphi 0, %s64
      %s86 = sphi 0, %s88
      %s89 = sphi 0, %s86
      %s90 = sphi 0, %s89
      %s106 = sphi 0, %s90
      %s110 = sphi 0, %s110
      %s112 = sphi 0, %s110
      %s113 = sphi 0, %s112
      %s127 = sphi 0, %s113
      %s131 = sphi 0, %s131
      %s133 = sphi 0, %s131
      %s134 = sphi 0, %s133
      %s148 = sphi 0, %s134
      %s152 = sphi 0, %s152
      %s154 = sphi 0, %s152
      %s155 = sphi 0, %s154
      %s169 = sphi 0, %s155
      %s173 = sphi 0, %s173
      %s175 = sphi 0, %s173
      %s176 = sphi 0, %s175
      %s190 = sphi 0, %s176
      %s196 = sphi 0, %s198
      %s199 = sphi 0, %s196
      %s200 = sphi 0, %s199
      %s216 = sphi 0, %s200
    $region4: #{tpu_custom_call.1} parent=1 // loop_header_branch
      %27 = sbr.rel (%p25) target = $region8
    $region5: #{tpu_custom_call.1} parent=1 // loop_body
      %s29 = ssub.s32 %s24, 1
      %s30 = ssub.s32 %s24, 2
      %s31 = sadd.s32 %s24, 1
      %s32 = ssub.s32 %s24, %s31
      %p33 = scmp.eq.s32.totalorder %s32, 0
      %s35 = sadd.s32 %s34, 1
      %s36 = scalar_select %p33, %s34, %s35
      %p39 = pneg %p33
      %p40 = scmp.eq.s32.totalorder %s24, 1
      %p41 = por %p39, %p40
      %p42 = scmp.ne.s32.totalorder %s34, %s37
      %p43 = scmp.eq.s32.totalorder %s24, 0
      %p44 = por %p42, %p43
      %p45 = scmp.ne.s32.totalorder %s34, %s37
      %p46 = scmp.eq.s32.totalorder %s29, 1
      %p47 = por %p45, %p46
      %p48 = scmp.ne.s32.totalorder %s37, %s38
      %p49 = scmp.eq.s32.totalorder %s29, 0
      %p50 = por %p48, %p49
      %p51 = scmp.ne.s32.totalorder %s37, %s38
      %p52 = scmp.eq.s32.totalorder %s30, 1
      %p53 = por %p51, %p52
      %p55 = scmp.ne.s32.totalorder %s38, %s54
      %p56 = scmp.eq.s32.totalorder %s30, 0
      %p57 = por %p55, %p56
      %s58 = ssub.s32 %s24, %s31
      %p59 = scmp.eq.s32.totalorder %s58, 0
      %s61 = sadd.s32 %s60, 1
      %s62 = scalar_select %p59, %s60, %s61
      %p65 = pneg %p59
      %p66 = scmp.eq.s32.totalorder %s24, 1
      %p67 = por %p65, %p66
      %p68 = scmp.ne.s32.totalorder %s60, %s63
      %p69 = scmp.eq.s32.totalorder %s24, 0
      %p70 = por %p68, %p69
      %p71 = scmp.ne.s32.totalorder %s60, %s63
      %p72 = scmp.eq.s32.totalorder %s29, 1
      %p73 = por %p71, %p72
      %p74 = scmp.ne.s32.totalorder %s63, %s64
      %p75 = scmp.eq.s32.totalorder %s29, 0
      %p76 = por %p74, %p75
      %p77 = scmp.ne.s32.totalorder %s63, %s64
      %p78 = scmp.eq.s32.totalorder %s30, 1
      %p79 = por %p77, %p78
      %p81 = scmp.ne.s32.totalorder %s64, %s80
      %p82 = scmp.eq.s32.totalorder %s30, 0
      %p83 = por %p81, %p82
      %s84 = ssub.s32 %s24, %s31
      %p85 = scmp.eq.s32.totalorder %s84, 0
      %s87 = sadd.s32 %s86, 1
      %s88 = scalar_select %p85, %s86, %s87
      %p91 = pneg %p85
      %p92 = scmp.eq.s32.totalorder %s24, 1
      %p93 = por %p91, %p92
      %p94 = scmp.ne.s32.totalorder %s86, %s89
      %p95 = scmp.eq.s32.totalorder %s24, 0
      %p96 = por %p94, %p95
      %p97 = scmp.ne.s32.totalorder %s86, %s89
      %p98 = scmp.eq.s32.totalorder %s29, 1
      %p99 = por %p97, %p98
      %p100 = scmp.ne.s32.totalorder %s89, %s90
      %p101 = scmp.eq.s32.totalorder %s29, 0
      %p102 = por %p100, %p101
      %p103 = scmp.ne.s32.totalorder %s89, %s90
      %p104 = scmp.eq.s32.totalorder %s30, 1
      %p105 = por %p103, %p104
      %p107 = scmp.ne.s32.totalorder %s90, %s106
      %p108 = scmp.eq.s32.totalorder %s30, 0
      %p109 = por %p107, %p108
      %s111 = sadd.s32 %s110, 1
      %p114 = scmp.eq.s32.totalorder %s24, 1
      %p115 = scmp.ne.s32.totalorder %s110, %s112
      %p116 = scmp.eq.s32.totalorder %s24, 0
      %p117 = por %p115, %p116
      %p118 = scmp.ne.s32.totalorder %s110, %s112
      %p119 = scmp.eq.s32.totalorder %s29, 1
      %p120 = por %p118, %p119
      %p121 = scmp.ne.s32.totalorder %s112, %s113
      %p122 = scmp.eq.s32.totalorder %s29, 0
      %p123 = por %p121, %p122
      %p124 = scmp.ne.s32.totalorder %s112, %s113
      %p125 = scmp.eq.s32.totalorder %s30, 1
      %p126 = por %p124, %p125
      %p128 = scmp.ne.s32.totalorder %s113, %s127
      %p129 = scmp.eq.s32.totalorder %s30, 0
      %p130 = por %p128, %p129
      %s132 = sadd.s32 %s131, 1
      %p135 = scmp.eq.s32.totalorder %s24, 1
      %p136 = scmp.ne.s32.totalorder %s131, %s133
      %p137 = scmp.eq.s32.totalorder %s24, 0
      %p138 = por %p136, %p137
      %p139 = scmp.ne.s32.totalorder %s131, %s133
      %p140 = scmp.eq.s32.totalorder %s29, 1
      %p141 = por %p139, %p140
      %p142 = scmp.ne.s32.totalorder %s133, %s134
      %p143 = scmp.eq.s32.totalorder %s29, 0
      %p144 = por %p142, %p143
      %p145 = scmp.ne.s32.totalorder %s133, %s134
      %p146 = scmp.eq.s32.totalorder %s30, 1
      %p147 = por %p145, %p146
      %p149 = scmp.ne.s32.totalorder %s134, %s148
      %p150 = scmp.eq.s32.totalorder %s30, 0
      %p151 = por %p149, %p150
      %s153 = sadd.s32 %s152, 1
      %p156 = scmp.eq.s32.totalorder %s24, 1
      %p157 = scmp.ne.s32.totalorder %s152, %s154
      %p158 = scmp.eq.s32.totalorder %s24, 0
      %p159 = por %p157, %p158
      %p160 = scmp.ne.s32.totalorder %s152, %s154
      %p161 = scmp.eq.s32.totalorder %s29, 1
      %p162 = por %p160, %p161
      %p163 = scmp.ne.s32.totalorder %s154, %s155
      %p164 = scmp.eq.s32.totalorder %s29, 0
      %p165 = por %p163, %p164
      %p166 = scmp.ne.s32.totalorder %s154, %s155
      %p167 = scmp.eq.s32.totalorder %s30, 1
      %p168 = por %p166, %p167
      %p170 = scmp.ne.s32.totalorder %s155, %s169
      %p171 = scmp.eq.s32.totalorder %s30, 0
      %p172 = por %p170, %p171
      %s174 = sadd.s32 %s173, 1
      %p177 = scmp.eq.s32.totalorder %s24, 1
      %p178 = scmp.ne.s32.totalorder %s173, %s175
      %p179 = scmp.eq.s32.totalorder %s24, 0
      %p180 = por %p178, %p179
      %p181 = scmp.ne.s32.totalorder %s173, %s175
      %p182 = scmp.eq.s32.totalorder %s29, 1
      %p183 = por %p181, %p182
      %p184 = scmp.ne.s32.totalorder %s175, %s176
      %p185 = scmp.eq.s32.totalorder %s29, 0
      %p186 = por %p184, %p185
      %p187 = scmp.ne.s32.totalorder %s175, %s176
      %p188 = scmp.eq.s32.totalorder %s30, 1
      %p189 = por %p187, %p188
      %p191 = scmp.ne.s32.totalorder %s176, %s190
      %p192 = scmp.eq.s32.totalorder %s30, 0
      %p193 = por %p191, %p192
      %s194 = ssub.s32 %s24, %s31
      %p195 = scmp.eq.s32.totalorder %s194, 0
      %s197 = sadd.s32 %s196, 1
      %s198 = scalar_select %p195, %s196, %s197
      %p201 = pneg %p195
      %p202 = scmp.eq.s32.totalorder %s24, 1
      %p203 = por %p201, %p202
      %p204 = scmp.ne.s32.totalorder %s196, %s199
      %p205 = scmp.eq.s32.totalorder %s24, 0
      %p206 = por %p204, %p205
      %p207 = scmp.ne.s32.totalorder %s196, %s199
      %p208 = scmp.eq.s32.totalorder %s29, 1
      %p209 = por %p207, %p208
      %p210 = scmp.ne.s32.totalorder %s199, %s200
      %p211 = scmp.eq.s32.totalorder %s29, 0
      %p212 = por %p210, %p211
      %p213 = scmp.ne.s32.totalorder %s199, %s200
      %p214 = scmp.eq.s32.totalorder %s30, 1
      %p215 = por %p213, %p214
      %p217 = scmp.ne.s32.totalorder %s200, %s216
      %p218 = scmp.eq.s32.totalorder %s30, 0
      %p219 = por %p217, %p218
      %p220 = scmp.le.s32.totalorder 1, %s24
      %p221 = scmp.lt.s32.totalorder %s24, 3
      %p222 = pnand %p220, %p221
      %p223 = pneg %p222
      // Predicated region
      $region9: #{tpu_custom_call.1} parent=5 // pred_check
        _
      $region10: #{tpu_custom_call.1} parent=5 // pred_check_branch
        %225 = sbr.rel (%p222) target = $region12
      $region11: #{tpu_custom_call.1} parent=5 // pred_region
        %s226 = ssub.s32 %s24, 1
        // Predicated region
        $region13: #{tpu_custom_call.1} parent=11 // pred_check
          %p227 = pneg %p123
        $region14: #{tpu_custom_call.1} parent=11 // pred_check_branch
          %229 = sbr.rel (%p227) target = $region16
        $region15: #{tpu_custom_call.1} parent=11 // pred_region
          %s231 = ssub.s32 512, 512
          %232 = vsyncadd [#allocation9], %s231
          %s233 = sshll.u32 [#allocation8], 4
          %s234 = int_to_ptr.vmem [resolvable:$true] %s233
          %239 = dma.hbm_to_vmem [thread:$0]  %s3, 512, %s234, [#allocation9], 128, 128, 8
        $region16: #{tpu_custom_call.1} parent=11 // pred_fallthru
          _
        // Predicated region
        $region17: #{tpu_custom_call.1} parent=11 // pred_check
          %p240 = pneg %p144
        $region18: #{tpu_custom_call.1} parent=11 // pred_check_branch
          %242 = sbr.rel (%p240) target = $region20
        $region19: #{tpu_custom_call.1} parent=11 // pred_region
          %s244 = ssub.s32 512, 512
          %245 = vsyncadd [#allocation9], %s244
          %s246 = sshll.u32 [#allocation10], 4
          %s247 = int_to_ptr.vmem [resolvable:$true] %s246
          %252 = dma.hbm_to_vmem [thread:$0]  %s4, 512, %s247, [#allocation9], 128, 128, 8
        $region20: #{tpu_custom_call.1} parent=11 // pred_fallthru
          _
        // Predicated region
        $region21: #{tpu_custom_call.1} parent=11 // pred_check
          %p253 = pneg %p165
        $region22: #{tpu_custom_call.1} parent=11 // pred_check_branch
          %255 = sbr.rel (%p253) target = $region24
        $region23: #{tpu_custom_call.1} parent=11 // pred_region
          %s257 = ssub.s32 512, 512
          %258 = vsyncadd [#allocation12], %s257
          %s259 = sshll.u32 [#allocation11], 4
          %s260 = int_to_ptr.vmem [resolvable:$true] %s259
          %265 = dma.hbm_to_vmem [thread:$0]  %s5, 512, %s260, [#allocation12], 128, 128, 8
        $region24: #{tpu_custom_call.1} parent=11 // pred_fallthru
          _
        // Predicated region
        $region25: #{tpu_custom_call.1} parent=11 // pred_check
          %p266 = pneg %p186
        $region26: #{tpu_custom_call.1} parent=11 // pred_check_branch
          %268 = sbr.rel (%p266) target = $region28
        $region27: #{tpu_custom_call.1} parent=11 // pred_region
          _
        $region28: #{tpu_custom_call.1} parent=11 // pred_fallthru
          _
      $region12: #{tpu_custom_call.1} parent=5 // pred_fallthru
        _
      %p269 = scmp.lt.s32.totalorder %s24, 2
      // Predicated region
      $region29: #{tpu_custom_call.1} parent=5 // pred_check
        %p270 = pneg %p269
      $region30: #{tpu_custom_call.1} parent=5 // pred_check_branch
        %272 = sbr.rel (%p270) target = $region32
      $region31: #{tpu_custom_call.1} parent=5 // pred_region
        // Predicated region
        $region33: #{tpu_custom_call.1} parent=31 // pred_check
          %p273 = pneg %p44
        $region34: #{tpu_custom_call.1} parent=31 // pred_check_branch
          %275 = sbr.rel (%p273) target = $region36
        $region35: #{tpu_custom_call.1} parent=31 // pred_region
          %s276 = sand.u32 %s34, 1
          %s277 = scalar_lea.sflag [#allocation3], %s276
          %s278 = sand.u32 %s34, 1
          %s279 = smul.addr %s278, 8
          %s280 = scalar_lea.vmem [#allocation2], %s279
          %s282 = ssub.s32 128, 128
          %283 = vsyncadd %s277, %s282
          %s284 = smul.addr %s24, 128
          %s285 = scalar_lea.hbm %s0, %s284
          %s287 = sshll.u32 %s280, 4
          %s288 = int_to_ptr.vmem [resolvable:$true] %s287
          %290 = dma.hbm_to_vmem [thread:$0]  %s285, 128, %s288, %s277
        $region36: #{tpu_custom_call.1} parent=31 // pred_fallthru
          _
        // Predicated region
        $region37: #{tpu_custom_call.1} parent=31 // pred_check
          %p291 = pneg %p70
        $region38: #{tpu_custom_call.1} parent=31 // pred_check_branch
          %293 = sbr.rel (%p291) target = $region40
        $region39: #{tpu_custom_call.1} parent=31 // pred_region
          %s294 = sand.u32 %s24, 1
          %s295 = scalar_lea.sflag [#allocation6], %s294
          %s296 = sand.u32 %s60, 1
          %s297 = smul.addr %s296, 8
          %s298 = scalar_lea.vmem [#allocation5], %s297
          %s300 = ssub.s32 128, 128
          %301 = vsyncadd %s295, %s300
          %s302 = smul.addr %s24, 128
          %s303 = scalar_lea.hbm %s1, %s302
          %s305 = sshll.u32 %s298, 4
          %s306 = int_to_ptr.vmem [resolvable:$true] %s305
          %308 = dma.hbm_to_vmem [thread:$0]  %s303, 128, %s306, %s295
        $region40: #{tpu_custom_call.1} parent=31 // pred_fallthru
          _
        // Predicated region
        $region41: #{tpu_custom_call.1} parent=31 // pred_check
          %p309 = pneg %p96
        $region42: #{tpu_custom_call.1} parent=31 // pred_check_branch
          %311 = sbr.rel (%p309) target = $region44
        $region43: #{tpu_custom_call.1} parent=31 // pred_region
          %s312 = sand.u32 %s24, 1
          %s313 = scalar_lea.sflag [#allocation6], %s312
          %s314 = sand.u32 %s86, 1
          %s315 = smul.addr %s314, 8
          %s316 = scalar_lea.vmem [#allocation7], %s315
          %s318 = ssub.s32 128, 128
          %319 = vsyncadd %s313, %s318
          %s320 = smul.addr %s24, 128
          %s321 = scalar_lea.hbm %s2, %s320
          %s323 = sshll.u32 %s316, 4
          %s324 = int_to_ptr.vmem [resolvable:$true] %s323
          %326 = dma.hbm_to_vmem [thread:$0]  %s321, 128, %s324, %s313
        $region44: #{tpu_custom_call.1} parent=31 // pred_fallthru
          _
      $region32: #{tpu_custom_call.1} parent=5 // pred_fallthru
        _
      %p327 = scmp.le.s32.totalorder 1, %s24
      %p328 = scmp.lt.s32.totalorder %s24, 3
      %p329 = pnand %p327, %p328
      %p330 = pneg %p329
      // Predicated region
      $region45: #{tpu_custom_call.1} parent=5 // pred_check
        _
      $region46: #{tpu_custom_call.1} parent=5 // pred_check_branch
        %332 = sbr.rel (%p329) target = $region48
      $region47: #{tpu_custom_call.1} parent=5 // pred_region
        %s333 = ssub.s32 %s24, 1
        %s334 = sand.u32 %s37, 1
        %s335 = scalar_lea.sflag [#allocation3], %s334
        %s336 = sand.u32 %s37, 1
        %s337 = smul.addr %s336, 8
        %s338 = scalar_lea.vmem [#allocation2], %s337
        // Predicated region
        $region49: #{tpu_custom_call.1} parent=47 // pred_check
          %p339 = pneg %p50
        $region50: #{tpu_custom_call.1} parent=47 // pred_check_branch
          %341 = sbr.rel (%p339) target = $region52
        $region51: #{tpu_custom_call.1} parent=47 // pred_region
          %342 = dma.done %s335, 128
        $region52: #{tpu_custom_call.1} parent=47 // pred_fallthru
          _
        %s343 = sand.u32 %s29, 1
        %s344 = scalar_lea.sflag [#allocation6], %s343
        %s345 = sand.u32 %s63, 1
        %s346 = smul.addr %s345, 8
        %s347 = scalar_lea.vmem [#allocation5], %s346
        // Predicated region
        $region53: #{tpu_custom_call.1} parent=47 // pred_check
          %p348 = pneg %p76
        $region54: #{tpu_custom_call.1} parent=47 // pred_check_branch
          %350 = sbr.rel (%p348) target = $region56
        $region55: #{tpu_custom_call.1} parent=47 // pred_region
          %351 = dma.done %s344, 128
        $region56: #{tpu_custom_call.1} parent=47 // pred_fallthru
          _
        %s352 = sand.u32 %s29, 1
        %s353 = scalar_lea.sflag [#allocation6], %s352
        %s354 = sand.u32 %s89, 1
        %s355 = smul.addr %s354, 8
        %s356 = scalar_lea.vmem [#allocation7], %s355
        // Predicated region
        $region57: #{tpu_custom_call.1} parent=47 // pred_check
          %p357 = pneg %p102
        $region58: #{tpu_custom_call.1} parent=47 // pred_check_branch
          %359 = sbr.rel (%p357) target = $region60
        $region59: #{tpu_custom_call.1} parent=47 // pred_region
          %360 = dma.done %s353, 128
        $region60: #{tpu_custom_call.1} parent=47 // pred_fallthru
          _
        // Predicated region
        $region61: #{tpu_custom_call.1} parent=47 // pred_check
          %p361 = pneg %p123
        $region62: #{tpu_custom_call.1} parent=47 // pred_check_branch
          %363 = sbr.rel (%p361) target = $region64
        $region63: #{tpu_custom_call.1} parent=47 // pred_region
          %364 = dma.done [#allocation9], 512
        $region64: #{tpu_custom_call.1} parent=47 // pred_fallthru
          _
        // Predicated region
        $region65: #{tpu_custom_call.1} parent=47 // pred_check
          %p365 = pneg %p144
        $region66: #{tpu_custom_call.1} parent=47 // pred_check_branch
          %367 = sbr.rel (%p365) target = $region68
        $region67: #{tpu_custom_call.1} parent=47 // pred_region
          %368 = dma.done [#allocation9], 512
        $region68: #{tpu_custom_call.1} parent=47 // pred_fallthru
          _
        // Predicated region
        $region69: #{tpu_custom_call.1} parent=47 // pred_check
          %p369 = pneg %p165
        $region70: #{tpu_custom_call.1} parent=47 // pred_check_branch
          %371 = sbr.rel (%p369) target = $region72
        $region71: #{tpu_custom_call.1} parent=47 // pred_region
          %372 = dma.done [#allocation12], 512
        $region72: #{tpu_custom_call.1} parent=47 // pred_fallthru
          _
        %s373 = sand.u32 %s37, 1
        %s374 = scalar_lea.sflag [#allocation3], %s373
        %s375 = sand.u32 %s37, 1
        %s376 = smul.addr %s375, 8
        %s377 = scalar_lea.vmem [#allocation2], %s376
        %p378 = pneg %p50
        %p379 = pneg %p47
        %s380 = sand.u32 %s29, 1
        %s381 = scalar_lea.sflag [#allocation6], %s380
        %s382 = sand.u32 %s63, 1
        %s383 = smul.addr %s382, 8
        %s384 = scalar_lea.vmem [#allocation5], %s383
        %p385 = pneg %p76
        %p386 = pneg %p73
        %s387 = sand.u32 %s29, 1
        %s388 = scalar_lea.sflag [#allocation6], %s387
        %s389 = sand.u32 %s89, 1
        %s390 = smul.addr %s389, 8
        %s391 = scalar_lea.vmem [#allocation7], %s390
        %p392 = pneg %p102
        %p393 = pneg %p99
        %p394 = pneg %p123
        %p395 = pneg %p120
        %p396 = pneg %p144
        %p397 = pneg %p141
        %p398 = pneg %p165
        %p399 = pneg %p162
        %p400 = pneg %p186
        %p401 = pneg %p183
        %p402 = pneg %p212
        %p403 = pneg %p209
        %s404 = sand.u32 %s199, 1
        %s405 = scalar_lea.sflag [#allocation4], %s404
        %s406 = sand.u32 %s199, 1
        %s407 = smul.addr %s406, 16
        %s408 = scalar_lea.vmem [#allocation13], %s407
        %v410 = vld [vmem:[%s338] sm:$0xff]
        %v411 = vld [vmem:[%s347] sm:$0xff]
        %v412 = vld [vmem:[%s356] sm:$0xff]
        %v413 = vpack.c.bf16 %v410, %v410
        %v414 = vld [vmem:[#allocation8] sm:$0xff]
        %v415 = vld [vmem:[#allocation8 + $0x8] sm:$0xff]
        %v416 = vld [vmem:[#allocation8 + $0x10] sm:$0xff]
        %v417 = vld [vmem:[#allocation8 + $0x18] sm:$0xff]
        %v422 = vunpack.c.l.b16 %v414
        %v423 = vunpack.c.h.b16 %v414
        %v424 = vunpack.c.l.b16 %v415
        %v425 = vunpack.c.h.b16 %v415
        %v426 = vunpack.c.l.b16 %v416
        %v427 = vunpack.c.h.b16 %v416
        %v428 = vunpack.c.l.b16 %v417
        %v429 = vunpack.c.h.b16 %v417
        %v430 = vpack.c.b16 %v424, %v422
        %v431 = vpack.c.b16 %v425, %v423
        %v432 = vpack.c.b16 %v428, %v426
        %v433 = vpack.c.b16 %v429, %v427
        %vm438 = vcmask 261120
        %v440 = vsel %vm438, %v413, 0
        %442 = vmatprep.subr.bf16.mxu0 %v431
        %443 = vmatpush1.bf16.msra.mxu0 %v430
        %444 = vmatprep.subr.bf16.mxu0 %v433
        %445 = vmatpush1.bf16.msra.mxu0 %v432
        %446 = vmatprep.subr.bf16.mxu0 0
        %447 = vmatpush1.bf16.msra.mxu0 0
        %448 = vmatprep.subr.bf16.mxu0 0
        %449 = vmatpush1.bf16.msra.mxu0 0
        %450 = vmatprep.subr.bf16.mxu0 0
        %451 = vmatpush1.bf16.msra.mxu0 0
        %452 = vmatprep.subr.bf16.mxu0 0
        %453 = vmatpush1.bf16.msra.mxu0 0
        %454 = vmatprep.subr.bf16.mxu0 0
        %455 = vmatpush1.bf16.msra.mxu0 0
        %456 = vmatprep.subr.bf16.mxu0 0
        %457 = vmatpush1.bf16.msra.mxu0 0
        %458 = vmatprep.subr.bf16.mxu0 0
        %459 = vmatpush1.bf16.msra.mxu0 0
        %460 = vmatprep.subr.bf16.mxu0 0
        %461 = vmatpush1.bf16.msra.mxu0 0
        %462 = vmatprep.subr.bf16.mxu0 0
        %463 = vmatpush1.bf16.msra.mxu0 0
        %464 = vmatprep.subr.bf16.mxu0 0
        %465 = vmatpush1.bf16.msra.mxu0 0
        %466 = vmatprep.subr.bf16.mxu0 0
        %467 = vmatpush1.bf16.msra.mxu0 0
        %468 = vmatprep.subr.bf16.mxu0 0
        %469 = vmatpush1.bf16.msra.mxu0 0
        %470 = vmatprep.subr.bf16.mxu0 0
        %471 = vmatpush1.bf16.msra.mxu0 0
        %472 = vmatprep.subr.bf16.mxu0 0
        %473 = vmatpush1.bf16.msra.mxu0 0
        %474 = vmatprep.mubr.bf16.mxu0 0
        %475 = vmatmul.mubr.bf16.gmra.mrb[0].mxu0 %v440
        %v476 = vpop.f32.mrb[0].mxu0
        %v477 = vadd.f32 0.0, %v476
        %v478 = vpop.f32.mrb[0].mxu0
        %v479 = vadd.f32 0.0, %v478
        %v480 = vpop.f32.mrb[0].mxu0
        %v481 = vpop.f32.mrb[0].mxu0
        %482 = vdwg.mxu0
        %v483 = vpack.c.bf16 %v477, %v477
        %v484 = vpack.c.bf16 %v479, %v479
        %v485 = vpack.c.bf16 %v411, %v411
        %v486 = vld [vmem:[#allocation10] sm:$0xff]
        %v487 = vld [vmem:[#allocation10 + $0x8] sm:$0xff]
        %v488 = vld [vmem:[#allocation10 + $0x10] sm:$0xff]
        %v489 = vld [vmem:[#allocation10 + $0x18] sm:$0xff]
        %v494 = vunpack.c.l.b16 %v486
        %v495 = vunpack.c.h.b16 %v486
        %v496 = vunpack.c.l.b16 %v487
        %v497 = vunpack.c.h.b16 %v487
        %v498 = vunpack.c.l.b16 %v488
        %v499 = vunpack.c.h.b16 %v488
        %v500 = vunpack.c.l.b16 %v489
        %v501 = vunpack.c.h.b16 %v489
        %v502 = vpack.c.b16 %v496, %v494
        %v503 = vpack.c.b16 %v497, %v495
        %v504 = vpack.c.b16 %v500, %v498
        %v505 = vpack.c.b16 %v501, %v499
        %v511 = vsel %vm438, %v485, 0
        %513 = vmatprep.subr.bf16.mxu0 %v503
        %514 = vmatpush1.bf16.msra.mxu0 %v502
        %515 = vmatprep.subr.bf16.mxu0 %v505
        %516 = vmatpush1.bf16.msra.mxu0 %v504
        %517 = vmatprep.subr.bf16.mxu0 0
        %518 = vmatpush1.bf16.msra.mxu0 0
        %519 = vmatprep.subr.bf16.mxu0 0
        %520 = vmatpush1.bf16.msra.mxu0 0
        %521 = vmatprep.subr.bf16.mxu0 0
        %522 = vmatpush1.bf16.msra.mxu0 0
        %523 = vmatprep.subr.bf16.mxu0 0
        %524 = vmatpush1.bf16.msra.mxu0 0
        %525 = vmatprep.subr.bf16.mxu0 0
        %526 = vmatpush1.bf16.msra.mxu0 0
        %527 = vmatprep.subr.bf16.mxu0 0
        %528 = vmatpush1.bf16.msra.mxu0 0
        %529 = vmatprep.subr.bf16.mxu0 0
        %530 = vmatpush1.bf16.msra.mxu0 0
        %531 = vmatprep.subr.bf16.mxu0 0
        %532 = vmatpush1.bf16.msra.mxu0 0
        %533 = vmatprep.subr.bf16.mxu0 0
        %534 = vmatpush1.bf16.msra.mxu0 0
        %535 = vmatprep.subr.bf16.mxu0 0
        %536 = vmatpush1.bf16.msra.mxu0 0
        %537 = vmatprep.subr.bf16.mxu0 0
        %538 = vmatpush1.bf16.msra.mxu0 0
        %539 = vmatprep.subr.bf16.mxu0 0
        %540 = vmatpush1.bf16.msra.mxu0 0
        %541 = vmatprep.subr.bf16.mxu0 0
        %542 = vmatpush1.bf16.msra.mxu0 0
        %543 = vmatprep.subr.bf16.mxu0 0
        %544 = vmatpush1.bf16.msra.mxu0 0
        %545 = vmatprep.mubr.bf16.mxu0 0
        %546 = vmatmul.mubr.bf16.gmra.mrb[0].mxu0 %v511
        %v547 = vpop.f32.mrb[0].mxu0
        %v548 = vadd.f32 0.0, %v547
        %v549 = vpop.f32.mrb[0].mxu0
        %v550 = vadd.f32 0.0, %v549
        %v551 = vpop.f32.mrb[0].mxu0
        %v552 = vpop.f32.mrb[0].mxu0
        %553 = vdwg.mxu0
        %v554 = vpack.c.bf16 %v548, %v548
        %v555 = vpack.c.bf16 %v550, %v550
        %v556 = vpack.c.bf16 %v412, %v412
        %v557 = vld [vmem:[#allocation11] sm:$0xff]
        %v558 = vld [vmem:[#allocation11 + $0x8] sm:$0xff]
        %v559 = vld [vmem:[#allocation11 + $0x10] sm:$0xff]
        %v560 = vld [vmem:[#allocation11 + $0x18] sm:$0xff]
        %v565 = vunpack.c.l.b16 %v557
        %v566 = vunpack.c.h.b16 %v557
        %v567 = vunpack.c.l.b16 %v558
        %v568 = vunpack.c.h.b16 %v558
        %v569 = vunpack.c.l.b16 %v559
        %v570 = vunpack.c.h.b16 %v559
        %v571 = vunpack.c.l.b16 %v560
        %v572 = vunpack.c.h.b16 %v560
        %v573 = vpack.c.b16 %v567, %v565
        %v574 = vpack.c.b16 %v568, %v566
        %v575 = vpack.c.b16 %v571, %v569
        %v576 = vpack.c.b16 %v572, %v570
        %v582 = vsel %vm438, %v556, 0
        %584 = vmatprep.subr.bf16.mxu0 %v574
        %585 = vmatpush1.bf16.msra.mxu0 %v573
        %586 = vmatprep.subr.bf16.mxu0 %v576
        %587 = vmatpush1.bf16.msra.mxu0 %v575
        %588 = vmatprep.subr.bf16.mxu0 0
        %589 = vmatpush1.bf16.msra.mxu0 0
        %590 = vmatprep.subr.bf16.mxu0 0
        %591 = vmatpush1.bf16.msra.mxu0 0
        %592 = vmatprep.subr.bf16.mxu0 0
        %593 = vmatpush1.bf16.msra.mxu0 0
        %594 = vmatprep.subr.bf16.mxu0 0
        %595 = vmatpush1.bf16.msra.mxu0 0
        %596 = vmatprep.subr.bf16.mxu0 0
        %597 = vmatpush1.bf16.msra.mxu0 0
        %598 = vmatprep.subr.bf16.mxu0 0
        %599 = vmatpush1.bf16.msra.mxu0 0
        %600 = vmatprep.subr.bf16.mxu0 0
        %601 = vmatpush1.bf16.msra.mxu0 0
        %602 = vmatprep.subr.bf16.mxu0 0
        %603 = vmatpush1.bf16.msra.mxu0 0
        %604 = vmatprep.subr.bf16.mxu0 0
        %605 = vmatpush1.bf16.msra.mxu0 0
        %606 = vmatprep.subr.bf16.mxu0 0
        %607 = vmatpush1.bf16.msra.mxu0 0
        %608 = vmatprep.subr.bf16.mxu0 0
        %609 = vmatpush1.bf16.msra.mxu0 0
        %610 = vmatprep.subr.bf16.mxu0 0
        %611 = vmatpush1.bf16.msra.mxu0 0
        %612 = vmatprep.subr.bf16.mxu0 0
        %613 = vmatpush1.bf16.msra.mxu0 0
        %614 = vmatprep.subr.bf16.mxu0 0
        %615 = vmatpush1.bf16.msra.mxu0 0
        %616 = vmatprep.mubr.bf16.mxu0 0
        %617 = vmatmul.mubr.bf16.gmra.mrb[0].mxu0 %v582
        %v618 = vpop.f32.mrb[0].mxu0
        %v619 = vadd.f32 0.0, %v618
        %v620 = vpop.f32.mrb[0].mxu0
        %v621 = vadd.f32 0.0, %v620
        %v622 = vpop.f32.mrb[0].mxu0
        %v623 = vpop.f32.mrb[0].mxu0
        %624 = vdwg.mxu0
        %v625 = vpack.c.bf16 %v619, %v619
        %v626 = vpack.c.bf16 %v621, %v621
        %628 = vrot.lane.b32.xlu0 %v554, 96
        %v629 = vpop.permute.xlu0 %628
        %v631 = vsel %vm438, %v629, 0
        %v634 = vsel %vm438, %v483, 0
        %636 = vmatprep.subr.bf16.mxu0 0
        %637 = vmatpush1.bf16.xpose.msra.mxu0 %v634
        %638 = vmatprep.subr.bf16.mxu0 0
        %639 = vmatpush1.bf16.xpose.msra.mxu0 0
        %640 = vmatprep.subr.bf16.mxu0 0
        %641 = vmatpush1.bf16.xpose.msra.mxu0 0
        %642 = vmatprep.subr.bf16.mxu0 0
        %643 = vmatpush1.bf16.xpose.msra.mxu0 0
        %644 = vmatprep.subr.bf16.mxu0 0
        %645 = vmatpush1.bf16.xpose.msra.mxu0 0
        %646 = vmatprep.subr.bf16.mxu0 0
        %647 = vmatpush1.bf16.xpose.msra.mxu0 0
        %648 = vmatprep.subr.bf16.mxu0 0
        %649 = vmatpush1.bf16.xpose.msra.mxu0 0
        %650 = vmatprep.subr.bf16.mxu0 0
        %651 = vmatpush1.bf16.xpose.msra.mxu0 0
        %652 = vmatprep.subr.bf16.mxu0 0
        %653 = vmatpush1.bf16.xpose.msra.mxu0 0
        %654 = vmatprep.subr.bf16.mxu0 0
        %655 = vmatpush1.bf16.xpose.msra.mxu0 0
        %656 = vmatprep.subr.bf16.mxu0 0
        %657 = vmatpush1.bf16.xpose.msra.mxu0 0
        %658 = vmatprep.subr.bf16.mxu0 0
        %659 = vmatpush1.bf16.xpose.msra.mxu0 0
        %660 = vmatprep.subr.bf16.mxu0 0
        %661 = vmatpush1.bf16.xpose.msra.mxu0 0
        %662 = vmatprep.subr.bf16.mxu0 0
        %663 = vmatpush1.bf16.xpose.msra.mxu0 0
        %664 = vmatprep.subr.bf16.mxu0 0
        %665 = vmatpush1.bf16.xpose.msra.mxu0 0
        %666 = vmatprep.subr.bf16.mxu0 0
        %667 = vmatpush1.bf16.xpose.msra.mxu0 0
        %668 = vmatprep.mubr.bf16.mxu0 0
        %669 = vmatmul.mubr.bf16.gmra.mrb[0].mxu0 %v631
        %v670 = vpop.f32.mrb[0].mxu0
        %v671 = vadd.f32 0.0, %v670
        %v672 = vpop.f32.mrb[0].mxu0
        %v673 = vpop.f32.mrb[0].mxu0
        %v674 = vpop.f32.mrb[0].mxu0
        %675 = vdwg.mxu0
        %677 = vrot.lane.b32.xlu0 %v483, 96
        %v678 = vpop.permute.xlu0 %677
        %v680 = vsel %vm438, %v678, 0
        %v683 = vsel %vm438, %v554, 0
        %685 = vmatprep.subr.bf16.mxu0 0
        %686 = vmatpush1.bf16.xpose.msra.mxu0 %v683
        %687 = vmatprep.subr.bf16.mxu0 0
        %688 = vmatpush1.bf16.xpose.msra.mxu0 0
        %689 = vmatprep.subr.bf16.mxu0 0
        %690 = vmatpush1.bf16.xpose.msra.mxu0 0
        %691 = vmatprep.subr.bf16.mxu0 0
        %692 = vmatpush1.bf16.xpose.msra.mxu0 0
        %693 = vmatprep.subr.bf16.mxu0 0
        %694 = vmatpush1.bf16.xpose.msra.mxu0 0
        %695 = vmatprep.subr.bf16.mxu0 0
        %696 = vmatpush1.bf16.xpose.msra.mxu0 0
        %697 = vmatprep.subr.bf16.mxu0 0
        %698 = vmatpush1.bf16.xpose.msra.mxu0 0
        %699 = vmatprep.subr.bf16.mxu0 0
        %700 = vmatpush1.bf16.xpose.msra.mxu0 0
        %701 = vmatprep.subr.bf16.mxu0 0
        %702 = vmatpush1.bf16.xpose.msra.mxu0 0
        %703 = vmatprep.subr.bf16.mxu0 0
        %704 = vmatpush1.bf16.xpose.msra.mxu0 0
        %705 = vmatprep.subr.bf16.mxu0 0
        %706 = vmatpush1.bf16.xpose.msra.mxu0 0
        %707 = vmatprep.subr.bf16.mxu0 0
        %708 = vmatpush1.bf16.xpose.msra.mxu0 0
        %709 = vmatprep.subr.bf16.mxu0 0
        %710 = vmatpush1.bf16.xpose.msra.mxu0 0
        %711 = vmatprep.subr.bf16.mxu0 0
        %712 = vmatpush1.bf16.xpose.msra.mxu0 0
        %713 = vmatprep.subr.bf16.mxu0 0
        %714 = vmatpush1.bf16.xpose.msra.mxu0 0
        %715 = vmatprep.subr.bf16.mxu0 0
        %716 = vmatpush1.bf16.xpose.msra.mxu0 0
        %717 = vmatprep.mubr.bf16.mxu0 0
        %718 = vmatmul.mubr.bf16.gmra.mrb[0].mxu0 %v680
        %v719 = vpop.f32.mrb[0].mxu0
        %v720 = vadd.f32 0.0, %v719
        %v721 = vpop.f32.mrb[0].mxu0
        %v722 = vpop.f32.mrb[0].mxu0
        %v723 = vpop.f32.mrb[0].mxu0
        %724 = vdwg.mxu0
        %vm725 = vcmask 64512
        %v726 = vsel %vm725, %v671, -inf
        %727 = vmax.xlane.f32.xlu0 %v726
        %v728 = vpop.xlane.xlu0 %727
        %v729 = vsub.f32 %v671, %v728
        %v730 = vmul.f32 %v729, 1.442695
        %v731 = vpow.pop %v730
        %v732 = vsel %vm725, %v731, 0.0
        %733 = vadd.xlane.f32.xlu0 %v732
        %v734 = vpop.xlane.xlu0 %733
        %v735 = vrcp.pop %v734
        %v736 = vmul.f32 %v731, %v735
        %v737 = vpack.c.bf16 %v736, %v736
        %v738 = vsel %vm725, %v720, -inf
        %739 = vmax.xlane.f32.xlu0 %v738
        %v740 = vpop.xlane.xlu0 %739
        %v741 = vsub.f32 %v720, %v740
        %v742 = vmul.f32 %v741, 1.442695
        %v743 = vpow.pop %v742
        %v744 = vsel %vm725, %v743, 0.0
        %745 = vadd.xlane.f32.xlu0 %v744
        %v746 = vpop.xlane.xlu0 %745
        %v747 = vrcp.pop %v746
        %v748 = vmul.f32 %v743, %v747
        %v749 = vpack.c.bf16 %v748, %v748
        %750 = vrot.lane.b32.xlu0 %v483, 64
        %v751 = vpop.permute.xlu0 %750
        %v753 = vsel %vm725, %v737, 0
        %vm755 = vcmask 1043456
        %v757 = vsel %vm755, %v751, 0
        %759 = vmatprep.subr.bf16.mxu0 0
        %760 = vmatpush1.bf16.msra.mxu0 %v757
        %761 = vmatprep.subr.bf16.mxu0 0
        %762 = vmatpush1.bf16.msra.mxu0 0
        %763 = vmatprep.subr.bf16.mxu0 0
        %764 = vmatpush1.bf16.msra.mxu0 0
        %765 = vmatprep.subr.bf16.mxu0 0
        %766 = vmatpush1.bf16.msra.mxu0 0
        %767 = vmatprep.subr.bf16.mxu0 0
        %768 = vmatpush1.bf16.msra.mxu0 0
        %769 = vmatprep.subr.bf16.mxu0 0
        %770 = vmatpush1.bf16.msra.mxu0 0
        %771 = vmatprep.subr.bf16.mxu0 0
        %772 = vmatpush1.bf16.msra.mxu0 0
        %773 = vmatprep.subr.bf16.mxu0 0
        %774 = vmatpush1.bf16.msra.mxu0 0
        %775 = vmatprep.subr.bf16.mxu0 0
        %776 = vmatpush1.bf16.msra.mxu0 0
        %777 = vmatprep.subr.bf16.mxu0 0
        %778 = vmatpush1.bf16.msra.mxu0 0
        %779 = vmatprep.subr.bf16.mxu0 0
        %780 = vmatpush1.bf16.msra.mxu0 0
        %781 = vmatprep.subr.bf16.mxu0 0
        %782 = vmatpush1.bf16.msra.mxu0 0
        %783 = vmatprep.subr.bf16.mxu0 0
        %784 = vmatpush1.bf16.msra.mxu0 0
        %785 = vmatprep.subr.bf16.mxu0 0
        %786 = vmatpush1.bf16.msra.mxu0 0
        %787 = vmatprep.subr.bf16.mxu0 0
        %788 = vmatpush1.bf16.msra.mxu0 0
        %789 = vmatprep.subr.bf16.mxu0 0
        %790 = vmatpush1.bf16.msra.mxu0 0
        %791 = vmatprep.mubr.bf16.mxu0 0
        %792 = vmatmul.mubr.bf16.gmra.mrb[0].mxu0 %v753
        %v793 = vpop.f32.mrb[0].mxu0
        %v794 = vadd.f32 %v411, %v793
        %v795 = vpop.f32.mrb[0].mxu0
        %v796 = vpop.f32.mrb[0].mxu0
        %v797 = vpop.f32.mrb[0].mxu0
        %798 = vdwg.mxu0
        %799 = vrot.lane.b32.xlu0 %v554, 64
        %v800 = vpop.permute.xlu0 %799
        %v802 = vsel %vm725, %v749, 0
        %v805 = vsel %vm755, %v800, 0
        %807 = vmatprep.subr.bf16.mxu0 0
        %808 = vmatpush1.bf16.msra.mxu0 %v805
        %809 = vmatprep.subr.bf16.mxu0 0
        %810 = vmatpush1.bf16.msra.mxu0 0
        %811 = vmatprep.subr.bf16.mxu0 0
        %812 = vmatpush1.bf16.msra.mxu0 0
        %813 = vmatprep.subr.bf16.mxu0 0
        %814 = vmatpush1.bf16.msra.mxu0 0
        %815 = vmatprep.subr.bf16.mxu0 0
        %816 = vmatpush1.bf16.msra.mxu0 0
        %817 = vmatprep.subr.bf16.mxu0 0
        %818 = vmatpush1.bf16.msra.mxu0 0
        %819 = vmatprep.subr.bf16.mxu0 0
        %820 = vmatpush1.bf16.msra.mxu0 0
        %821 = vmatprep.subr.bf16.mxu0 0
        %822 = vmatpush1.bf16.msra.mxu0 0
        %823 = vmatprep.subr.bf16.mxu0 0
        %824 = vmatpush1.bf16.msra.mxu0 0
        %825 = vmatprep.subr.bf16.mxu0 0
        %826 = vmatpush1.bf16.msra.mxu0 0
        %827 = vmatprep.subr.bf16.mxu0 0
        %828 = vmatpush1.bf16.msra.mxu0 0
        %829 = vmatprep.subr.bf16.mxu0 0
        %830 = vmatpush1.bf16.msra.mxu0 0
        %831 = vmatprep.subr.bf16.mxu0 0
        %832 = vmatpush1.bf16.msra.mxu0 0
        %833 = vmatprep.subr.bf16.mxu0 0
        %834 = vmatpush1.bf16.msra.mxu0 0
        %835 = vmatprep.subr.bf16.mxu0 0
        %836 = vmatpush1.bf16.msra.mxu0 0
        %837 = vmatprep.subr.bf16.mxu0 0
        %838 = vmatpush1.bf16.msra.mxu0 0
        %839 = vmatprep.mubr.bf16.mxu0 0
        %840 = vmatmul.mubr.bf16.gmra.mrb[0].mxu0 %v802
        %v841 = vpop.f32.mrb[0].mxu0
        %v842 = vadd.f32 %v410, %v841
        %v843 = vpop.f32.mrb[0].mxu0
        %v844 = vpop.f32.mrb[0].mxu0
        %v845 = vpop.f32.mrb[0].mxu0
        %846 = vdwg.mxu0
        %v848 = vsel %vm438, %v555, 0
        %v851 = vsel %vm438, %v625, 0
        %853 = vmatprep.subr.bf16.mxu0 0
        %854 = vmatpush1.bf16.xpose.msra.mxu0 %v851
        %855 = vmatprep.subr.bf16.mxu0 0
        %856 = vmatpush1.bf16.xpose.msra.mxu0 0
        %857 = vmatprep.subr.bf16.mxu0 0
        %858 = vmatpush1.bf16.xpose.msra.mxu0 0
        %859 = vmatprep.subr.bf16.mxu0 0
        %860 = vmatpush1.bf16.xpose.msra.mxu0 0
        %861 = vmatprep.subr.bf16.mxu0 0
        %862 = vmatpush1.bf16.xpose.msra.mxu0 0
        %863 = vmatprep.subr.bf16.mxu0 0
        %864 = vmatpush1.bf16.xpose.msra.mxu0 0
        %865 = vmatprep.subr.bf16.mxu0 0
        %866 = vmatpush1.bf16.xpose.msra.mxu0 0
        %867 = vmatprep.subr.bf16.mxu0 0
        %868 = vmatpush1.bf16.xpose.msra.mxu0 0
        %869 = vmatprep.subr.bf16.mxu0 0
        %870 = vmatpush1.bf16.xpose.msra.mxu0 0
        %871 = vmatprep.subr.bf16.mxu0 0
        %872 = vmatpush1.bf16.xpose.msra.mxu0 0
        %873 = vmatprep.subr.bf16.mxu0 0
        %874 = vmatpush1.bf16.xpose.msra.mxu0 0
        %875 = vmatprep.subr.bf16.mxu0 0
        %876 = vmatpush1.bf16.xpose.msra.mxu0 0
        %877 = vmatprep.subr.bf16.mxu0 0
        %878 = vmatpush1.bf16.xpose.msra.mxu0 0
        %879 = vmatprep.subr.bf16.mxu0 0
        %880 = vmatpush1.bf16.xpose.msra.mxu0 0
        %881 = vmatprep.subr.bf16.mxu0 0
        %882 = vmatpush1.bf16.xpose.msra.mxu0 0
        %883 = vmatprep.subr.bf16.mxu0 0
        %884 = vmatpush1.bf16.xpose.msra.mxu0 0
        %885 = vmatprep.mubr.bf16.mxu0 0
        %886 = vmatmul.mubr.bf16.gmra.mrb[0].mxu0 %v848
        %v887 = vpop.f32.mrb[0].mxu0
        %v888 = vadd.f32 0.0, %v887
        %v889 = vpop.f32.mrb[0].mxu0
        %v890 = vpop.f32.mrb[0].mxu0
        %v891 = vpop.f32.mrb[0].mxu0
        %892 = vdwg.mxu0
        %894 = vrot.lane.b32.xlu0 %v625, 96
        %v895 = vpop.permute.xlu0 %894
        %896 = vrot.lane.b32.xlu0 %v554, 32
        %v897 = vpop.permute.xlu0 %896
        %v899 = vsel %vm438, %v895, 0
        %v902 = vsel %vm438, %v897, 0
        %904 = vmatprep.subr.bf16.mxu0 0
        %905 = vmatpush1.bf16.xpose.msra.mxu0 %v902
        %906 = vmatprep.subr.bf16.mxu0 0
        %907 = vmatpush1.bf16.xpose.msra.mxu0 0
        %908 = vmatprep.subr.bf16.mxu0 0
        %909 = vmatpush1.bf16.xpose.msra.mxu0 0
        %910 = vmatprep.subr.bf16.mxu0 0
        %911 = vmatpush1.bf16.xpose.msra.mxu0 0
        %912 = vmatprep.subr.bf16.mxu0 0
        %913 = vmatpush1.bf16.xpose.msra.mxu0 0
        %914 = vmatprep.subr.bf16.mxu0 0
        %915 = vmatpush1.bf16.xpose.msra.mxu0 0
        %916 = vmatprep.subr.bf16.mxu0 0
        %917 = vmatpush1.bf16.xpose.msra.mxu0 0
        %918 = vmatprep.subr.bf16.mxu0 0
        %919 = vmatpush1.bf16.xpose.msra.mxu0 0
        %920 = vmatprep.subr.bf16.mxu0 0
        %921 = vmatpush1.bf16.xpose.msra.mxu0 0
        %922 = vmatprep.subr.bf16.mxu0 0
        %923 = vmatpush1.bf16.xpose.msra.mxu0 0
        %924 = vmatprep.subr.bf16.mxu0 0
        %925 = vmatpush1.bf16.xpose.msra.mxu0 0
        %926 = vmatprep.subr.bf16.mxu0 0
        %927 = vmatpush1.bf16.xpose.msra.mxu0 0
        %928 = vmatprep.subr.bf16.mxu0 0
        %929 = vmatpush1.bf16.xpose.msra.mxu0 0
        %930 = vmatprep.subr.bf16.mxu0 0
        %931 = vmatpush1.bf16.xpose.msra.mxu0 0
        %932 = vmatprep.subr.bf16.mxu0 0
        %933 = vmatpush1.bf16.xpose.msra.mxu0 0
        %934 = vmatprep.subr.bf16.mxu0 0
        %935 = vmatpush1.bf16.xpose.msra.mxu0 0
        %936 = vmatprep.mubr.bf16.mxu0 0
        %937 = vmatmul.mubr.bf16.gmra.mrb[0].mxu0 %v899
        %v938 = vpop.f32.mrb[0].mxu0
        %v939 = vadd.f32 0.0, %v938
        %v940 = vpop.f32.mrb[0].mxu0
        %v941 = vpop.f32.mrb[0].mxu0
        %v942 = vpop.f32.mrb[0].mxu0
        %943 = vdwg.mxu0
        %v944 = vsel %vm725, %v888, -inf
        %945 = vmax.xlane.f32.xlu0 %v944
        %v946 = vpop.xlane.xlu0 %945
        %v947 = vsub.f32 %v888, %v946
        %v948 = vmul.f32 %v947, 1.442695
        %v949 = vpow.pop %v948
        %v950 = vsel %vm725, %v949, 0.0
        %951 = vadd.xlane.f32.xlu0 %v950
        %v952 = vpop.xlane.xlu0 %951
        %v953 = vrcp.pop %v952
        %v954 = vmul.f32 %v949, %v953
        %v955 = vpack.c.bf16 %v954, %v954
        %v956 = vsel %vm725, %v939, -inf
        %957 = vmax.xlane.f32.xlu0 %v956
        %v958 = vpop.xlane.xlu0 %957
        %v959 = vsub.f32 %v939, %v958
        %v960 = vmul.f32 %v959, 1.442695
        %v961 = vpow.pop %v960
        %v962 = vsel %vm725, %v961, 0.0
        %963 = vadd.xlane.f32.xlu0 %v962
        %v964 = vpop.xlane.xlu0 %963
        %v965 = vrcp.pop %v964
        %v966 = vmul.f32 %v961, %v965
        %v967 = vpack.c.bf16 %v966, %v966
        %968 = vrot.lane.b32.xlu0 %v625, 64
        %v969 = vpop.permute.xlu0 %968
        %v971 = vsel %vm725, %v955, 0
        %v974 = vsel %vm755, %v969, 0
        %976 = vmatprep.subr.bf16.mxu0 0
        %977 = vmatpush1.bf16.msra.mxu0 %v974
        %978 = vmatprep.subr.bf16.mxu0 0
        %979 = vmatpush1.bf16.msra.mxu0 0
        %980 = vmatprep.subr.bf16.mxu0 0
        %981 = vmatpush1.bf16.msra.mxu0 0
        %982 = vmatprep.subr.bf16.mxu0 0
        %983 = vmatpush1.bf16.msra.mxu0 0
        %984 = vmatprep.subr.bf16.mxu0 0
        %985 = vmatpush1.bf16.msra.mxu0 0
        %986 = vmatprep.subr.bf16.mxu0 0
        %987 = vmatpush1.bf16.msra.mxu0 0
        %988 = vmatprep.subr.bf16.mxu0 0
        %989 = vmatpush1.bf16.msra.mxu0 0
        %990 = vmatprep.subr.bf16.mxu0 0
        %991 = vmatpush1.bf16.msra.mxu0 0
        %992 = vmatprep.subr.bf16.mxu0 0
        %993 = vmatpush1.bf16.msra.mxu0 0
        %994 = vmatprep.subr.bf16.mxu0 0
        %995 = vmatpush1.bf16.msra.mxu0 0
        %996 = vmatprep.subr.bf16.mxu0 0
        %997 = vmatpush1.bf16.msra.mxu0 0
        %998 = vmatprep.subr.bf16.mxu0 0
        %999 = vmatpush1.bf16.msra.mxu0 0
        %1000 = vmatprep.subr.bf16.mxu0 0
        %1001 = vmatpush1.bf16.msra.mxu0 0
        %1002 = vmatprep.subr.bf16.mxu0 0
        %1003 = vmatpush1.bf16.msra.mxu0 0
        %1004 = vmatprep.subr.bf16.mxu0 0
        %1005 = vmatpush1.bf16.msra.mxu0 0
        %1006 = vmatprep.subr.bf16.mxu0 0
        %1007 = vmatpush1.bf16.msra.mxu0 0
        %1008 = vmatprep.mubr.bf16.mxu0 0
        %1009 = vmatmul.mubr.bf16.gmra.mrb[0].mxu0 %v971
        %v1010 = vpop.f32.mrb[0].mxu0
        %v1011 = vadd.f32 %v411, %v1010
        %v1012 = vpop.f32.mrb[0].mxu0
        %v1013 = vpop.f32.mrb[0].mxu0
        %v1014 = vpop.f32.mrb[0].mxu0
        %1015 = vdwg.mxu0
        %1017 = vrot.lane.b32.xlu0 %v555, 96
        %v1018 = vpop.permute.xlu0 %1017
        %v1020 = vsel %vm725, %v967, 0
        %v1023 = vsel %vm755, %v1018, 0
        %1025 = vmatprep.subr.bf16.mxu0 0
        %1026 = vmatpush1.bf16.msra.mxu0 %v1023
        %1027 = vmatprep.subr.bf16.mxu0 0
        %1028 = vmatpush1.bf16.msra.mxu0 0
        %1029 = vmatprep.subr.bf16.mxu0 0
        %1030 = vmatpush1.bf16.msra.mxu0 0
        %1031 = vmatprep.subr.bf16.mxu0 0
        %1032 = vmatpush1.bf16.msra.mxu0 0
        %1033 = vmatprep.subr.bf16.mxu0 0
        %1034 = vmatpush1.bf16.msra.mxu0 0
        %1035 = vmatprep.subr.bf16.mxu0 0
        %1036 = vmatpush1.bf16.msra.mxu0 0
        %1037 = vmatprep.subr.bf16.mxu0 0
        %1038 = vmatpush1.bf16.msra.mxu0 0
        %1039 = vmatprep.subr.bf16.mxu0 0
        %1040 = vmatpush1.bf16.msra.mxu0 0
        %1041 = vmatprep.subr.bf16.mxu0 0
        %1042 = vmatpush1.bf16.msra.mxu0 0
        %1043 = vmatprep.subr.bf16.mxu0 0
        %1044 = vmatpush1.bf16.msra.mxu0 0
        %1045 = vmatprep.subr.bf16.mxu0 0
        %1046 = vmatpush1.bf16.msra.mxu0 0
        %1047 = vmatprep.subr.bf16.mxu0 0
        %1048 = vmatpush1.bf16.msra.mxu0 0
        %1049 = vmatprep.subr.bf16.mxu0 0
        %1050 = vmatpush1.bf16.msra.mxu0 0
        %1051 = vmatprep.subr.bf16.mxu0 0
        %1052 = vmatpush1.bf16.msra.mxu0 0
        %1053 = vmatprep.subr.bf16.mxu0 0
        %1054 = vmatpush1.bf16.msra.mxu0 0
        %1055 = vmatprep.subr.bf16.mxu0 0
        %1056 = vmatpush1.bf16.msra.mxu0 0
        %1057 = vmatprep.mubr.bf16.mxu0 0
        %1058 = vmatmul.mubr.bf16.gmra.mrb[0].mxu0 %v1020
        %v1059 = vpop.f32.mrb[0].mxu0
        %v1060 = vadd.f32 %v412, %v1059
        %v1061 = vpop.f32.mrb[0].mxu0
        %v1062 = vpop.f32.mrb[0].mxu0
        %v1063 = vpop.f32.mrb[0].mxu0
        %1064 = vdwg.mxu0
        %1065 = vrot.lane.b32.xlu0 %v483, 32
        %v1066 = vpop.permute.xlu0 %1065
        %v1068 = vsel %vm438, %v626, 0
        %v1071 = vsel %vm438, %v1066, 0
        %1073 = vmatprep.subr.bf16.mxu0 0
        %1074 = vmatpush1.bf16.xpose.msra.mxu0 %v1071
        %1075 = vmatprep.subr.bf16.mxu0 0
        %1076 = vmatpush1.bf16.xpose.msra.mxu0 0
        %1077 = vmatprep.subr.bf16.mxu0 0
        %1078 = vmatpush1.bf16.xpose.msra.mxu0 0
        %1079 = vmatprep.subr.bf16.mxu0 0
        %1080 = vmatpush1.bf16.xpose.msra.mxu0 0
        %1081 = vmatprep.subr.bf16.mxu0 0
        %1082 = vmatpush1.bf16.xpose.msra.mxu0 0
        %1083 = vmatprep.subr.bf16.mxu0 0
        %1084 = vmatpush1.bf16.xpose.msra.mxu0 0
        %1085 = vmatprep.subr.bf16.mxu0 0
        %1086 = vmatpush1.bf16.xpose.msra.mxu0 0
        %1087 = vmatprep.subr.bf16.mxu0 0
        %1088 = vmatpush1.bf16.xpose.msra.mxu0 0
        %1089 = vmatprep.subr.bf16.mxu0 0
        %1090 = vmatpush1.bf16.xpose.msra.mxu0 0
        %1091 = vmatprep.subr.bf16.mxu0 0
        %1092 = vmatpush1.bf16.xpose.msra.mxu0 0
        %1093 = vmatprep.subr.bf16.mxu0 0
        %1094 = vmatpush1.bf16.xpose.msra.mxu0 0
        %1095 = vmatprep.subr.bf16.mxu0 0
        %1096 = vmatpush1.bf16.xpose.msra.mxu0 0
        %1097 = vmatprep.subr.bf16.mxu0 0
        %1098 = vmatpush1.bf16.xpose.msra.mxu0 0
        %1099 = vmatprep.subr.bf16.mxu0 0
        %1100 = vmatpush1.bf16.xpose.msra.mxu0 0
        %1101 = vmatprep.subr.bf16.mxu0 0
        %1102 = vmatpush1.bf16.xpose.msra.mxu0 0
        %1103 = vmatprep.subr.bf16.mxu0 0
        %1104 = vmatpush1.bf16.xpose.msra.mxu0 0
        %1105 = vmatprep.mubr.bf16.mxu0 0
        %1106 = vmatmul.mubr.bf16.gmra.mrb[0].mxu0 %v1068
        %v1107 = vpop.f32.mrb[0].mxu0
        %v1108 = vadd.f32 0.0, %v1107
        %v1109 = vpop.f32.mrb[0].mxu0
        %v1110 = vpop.f32.mrb[0].mxu0
        %v1111 = vpop.f32.mrb[0].mxu0
        %1112 = vdwg.mxu0
        %1113 = vrot.lane.b32.xlu0 %v625, 32
        %v1114 = vpop.permute.xlu0 %1113
        %v1116 = vsel %vm438, %v484, 0
        %v1119 = vsel %vm438, %v1114, 0
        %1121 = vmatprep.subr.bf16.mxu0 0
        %1122 = vmatpush1.bf16.xpose.msra.mxu0 %v1119
        %1123 = vmatprep.subr.bf16.mxu0 0
        %1124 = vmatpush1.bf16.xpose.msra.mxu0 0
        %1125 = vmatprep.subr.bf16.mxu0 0
        %1126 = vmatpush1.bf16.xpose.msra.mxu0 0
        %1127 = vmatprep.subr.bf16.mxu0 0
        %1128 = vmatpush1.bf16.xpose.msra.mxu0 0
        %1129 = vmatprep.subr.bf16.mxu0 0
        %1130 = vmatpush1.bf16.xpose.msra.mxu0 0
        %1131 = vmatprep.subr.bf16.mxu0 0
        %1132 = vmatpush1.bf16.xpose.msra.mxu0 0
        %1133 = vmatprep.subr.bf16.mxu0 0
        %1134 = vmatpush1.bf16.xpose.msra.mxu0 0
        %1135 = vmatprep.subr.bf16.mxu0 0
        %1136 = vmatpush1.bf16.xpose.msra.mxu0 0
        %1137 = vmatprep.subr.bf16.mxu0 0
        %1138 = vmatpush1.bf16.xpose.msra.mxu0 0
        %1139 = vmatprep.subr.bf16.mxu0 0
        %1140 = vmatpush1.bf16.xpose.msra.mxu0 0
        %1141 = vmatprep.subr.bf16.mxu0 0
        %1142 = vmatpush1.bf16.xpose.msra.mxu0 0
        %1143 = vmatprep.subr.bf16.mxu0 0
        %1144 = vmatpush1.bf16.xpose.msra.mxu0 0
        %1145 = vmatprep.subr.bf16.mxu0 0
        %1146 = vmatpush1.bf16.xpose.msra.mxu0 0
        %1147 = vmatprep.subr.bf16.mxu0 0
        %1148 = vmatpush1.bf16.xpose.msra.mxu0 0
        %1149 = vmatprep.subr.bf16.mxu0 0
        %1150 = vmatpush1.bf16.xpose.msra.mxu0 0
        %1151 = vmatprep.subr.bf16.mxu0 0
        %1152 = vmatpush1.bf16.xpose.msra.mxu0 0
        %1153 = vmatprep.mubr.bf16.mxu0 0
        %1154 = vmatmul.mubr.bf16.gmra.mrb[0].mxu0 %v1116
        %v1155 = vpop.f32.mrb[0].mxu0
        %v1156 = vadd.f32 0.0, %v1155
        %v1157 = vpop.f32.mrb[0].mxu0
        %v1158 = vpop.f32.mrb[0].mxu0
        %v1159 = vpop.f32.mrb[0].mxu0
        %1160 = vdwg.mxu0
        %v1161 = vsel %vm725, %v1108, -inf
        %1162 = vmax.xlane.f32.xlu0 %v1161
        %v1163 = vpop.xlane.xlu0 %1162
        %v1164 = vsub.f32 %v1108, %v1163
        %v1165 = vmul.f32 %v1164, 1.442695
        %v1166 = vpow.pop %v1165
        %v1167 = vsel %vm725, %v1166, 0.0
        %1168 = vadd.xlane.f32.xlu0 %v1167
        %v1169 = vpop.xlane.xlu0 %1168
        %v1170 = vrcp.pop %v1169
        %v1171 = vmul.f32 %v1166, %v1170
        %v1172 = vpack.c.bf16 %v1171, %v1171
        %v1173 = vsel %vm725, %v1156, -inf
        %1174 = vmax.xlane.f32.xlu0 %v1173
        %v1175 = vpop.xlane.xlu0 %1174
        %v1176 = vsub.f32 %v1156, %v1175
        %v1177 = vmul.f32 %v1176, 1.442695
        %v1178 = vpow.pop %v1177
        %v1179 = vsel %vm725, %v1178, 0.0
        %1180 = vadd.xlane.f32.xlu0 %v1179
        %v1181 = vpop.xlane.xlu0 %1180
        %v1182 = vrcp.pop %v1181
        %v1183 = vmul.f32 %v1178, %v1182
        %v1184 = vpack.c.bf16 %v1183, %v1183
        %1186 = vrot.lane.b32.xlu0 %v484, 96
        %v1187 = vpop.permute.xlu0 %1186
        %v1189 = vsel %vm725, %v1172, 0
        %v1192 = vsel %vm755, %v1187, 0
        %1194 = vmatprep.subr.bf16.mxu0 0
        %1195 = vmatpush1.bf16.msra.mxu0 %v1192
        %1196 = vmatprep.subr.bf16.mxu0 0
        %1197 = vmatpush1.bf16.msra.mxu0 0
        %1198 = vmatprep.subr.bf16.mxu0 0
        %1199 = vmatpush1.bf16.msra.mxu0 0
        %1200 = vmatprep.subr.bf16.mxu0 0
        %1201 = vmatpush1.bf16.msra.mxu0 0
        %1202 = vmatprep.subr.bf16.mxu0 0
        %1203 = vmatpush1.bf16.msra.mxu0 0
        %1204 = vmatprep.subr.bf16.mxu0 0
        %1205 = vmatpush1.bf16.msra.mxu0 0
        %1206 = vmatprep.subr.bf16.mxu0 0
        %1207 = vmatpush1.bf16.msra.mxu0 0
        %1208 = vmatprep.subr.bf16.mxu0 0
        %1209 = vmatpush1.bf16.msra.mxu0 0
        %1210 = vmatprep.subr.bf16.mxu0 0
        %1211 = vmatpush1.bf16.msra.mxu0 0
        %1212 = vmatprep.subr.bf16.mxu0 0
        %1213 = vmatpush1.bf16.msra.mxu0 0
        %1214 = vmatprep.subr.bf16.mxu0 0
        %1215 = vmatpush1.bf16.msra.mxu0 0
        %1216 = vmatprep.subr.bf16.mxu0 0
        %1217 = vmatpush1.bf16.msra.mxu0 0
        %1218 = vmatprep.subr.bf16.mxu0 0
        %1219 = vmatpush1.bf16.msra.mxu0 0
        %1220 = vmatprep.subr.bf16.mxu0 0
        %1221 = vmatpush1.bf16.msra.mxu0 0
        %1222 = vmatprep.subr.bf16.mxu0 0
        %1223 = vmatpush1.bf16.msra.mxu0 0
        %1224 = vmatprep.subr.bf16.mxu0 0
        %1225 = vmatpush1.bf16.msra.mxu0 0
        %1226 = vmatprep.mubr.bf16.mxu0 0
        %1227 = vmatmul.mubr.bf16.gmra.mrb[0].mxu0 %v1189
        %v1228 = vpop.f32.mrb[0].mxu0
        %v1229 = vadd.f32 %v412, %v1228
        %v1230 = vpop.f32.mrb[0].mxu0
        %v1231 = vpop.f32.mrb[0].mxu0
        %v1232 = vpop.f32.mrb[0].mxu0
        %1233 = vdwg.mxu0
        %1235 = vrot.lane.b32.xlu0 %v626, 96
        %v1236 = vpop.permute.xlu0 %1235
        %v1238 = vsel %vm725, %v1184, 0
        %v1241 = vsel %vm755, %v1236, 0
        %1243 = vmatprep.subr.bf16.mxu0 0
        %1244 = vmatpush1.bf16.msra.mxu0 %v1241
        %1245 = vmatprep.subr.bf16.mxu0 0
        %1246 = vmatpush1.bf16.msra.mxu0 0
        %1247 = vmatprep.subr.bf16.mxu0 0
        %1248 = vmatpush1.bf16.msra.mxu0 0
        %1249 = vmatprep.subr.bf16.mxu0 0
        %1250 = vmatpush1.bf16.msra.mxu0 0
        %1251 = vmatprep.subr.bf16.mxu0 0
        %1252 = vmatpush1.bf16.msra.mxu0 0
        %1253 = vmatprep.subr.bf16.mxu0 0
        %1254 = vmatpush1.bf16.msra.mxu0 0
        %1255 = vmatprep.subr.bf16.mxu0 0
        %1256 = vmatpush1.bf16.msra.mxu0 0
        %1257 = vmatprep.subr.bf16.mxu0 0
        %1258 = vmatpush1.bf16.msra.mxu0 0
        %1259 = vmatprep.subr.bf16.mxu0 0
        %1260 = vmatpush1.bf16.msra.mxu0 0
        %1261 = vmatprep.subr.bf16.mxu0 0
        %1262 = vmatpush1.bf16.msra.mxu0 0
        %1263 = vmatprep.subr.bf16.mxu0 0
        %1264 = vmatpush1.bf16.msra.mxu0 0
        %1265 = vmatprep.subr.bf16.mxu0 0
        %1266 = vmatpush1.bf16.msra.mxu0 0
        %1267 = vmatprep.subr.bf16.mxu0 0
        %1268 = vmatpush1.bf16.msra.mxu0 0
        %1269 = vmatprep.subr.bf16.mxu0 0
        %1270 = vmatpush1.bf16.msra.mxu0 0
        %1271 = vmatprep.subr.bf16.mxu0 0
        %1272 = vmatpush1.bf16.msra.mxu0 0
        %1273 = vmatprep.subr.bf16.mxu0 0
        %1274 = vmatpush1.bf16.msra.mxu0 0
        %1275 = vmatprep.mubr.bf16.mxu0 0
        %1276 = vmatmul.mubr.bf16.gmra.mrb[0].mxu0 %v1238
        %v1277 = vpop.f32.mrb[0].mxu0
        %v1278 = vadd.f32 %v410, %v1277
        %v1279 = vpop.f32.mrb[0].mxu0
        %v1280 = vpop.f32.mrb[0].mxu0
        %v1281 = vpop.f32.mrb[0].mxu0
        %1282 = vdwg.mxu0
        %v1283 = vadd.f32 %v1011, %v1060
        %v1284 = vadd.f32 %v1278, %v1229
        %v1285 = vadd.f32 %v794, %v842
        %v1286 = vpack.c.bf16 %v1283, %v1283
        %v1287 = vld [vmem:[%s6] sm:$0xf]
        %v1288 = vld [vmem:[%s6 + $0x4] sm:$0xf]
        %v1289 = vld [vmem:[%s6 + $0x8] sm:$0xf]
        %v1290 = vld [vmem:[%s6 + $0xc] sm:$0xf]
        %v1295 = vunpack.c.l.b16 %v1287
        %v1296 = vunpack.c.l.b16 %v1288
        %v1297 = vunpack.c.l.b16 %v1289
        %v1298 = vunpack.c.l.b16 %v1290
        %v1299 = vpack.c.b16 %v1296, %v1295
        %v1300 = vpack.c.b16 %v1298, %v1297
        %v1304 = vsel %vm438, %v1286, 0
        %1306 = vmatprep.subr.bf16.mxu0 0
        %1307 = vmatpush1.bf16.msra.mxu0 %v1299
        %1308 = vmatprep.subr.bf16.mxu0 0
        %1309 = vmatpush1.bf16.msra.mxu0 %v1300
        %1310 = vmatprep.subr.bf16.mxu0 0
        %1311 = vmatpush1.bf16.msra.mxu0 0
        %1312 = vmatprep.subr.bf16.mxu0 0
        %1313 = vmatpush1.bf16.msra.mxu0 0
        %1314 = vmatprep.subr.bf16.mxu0 0
        %1315 = vmatpush1.bf16.msra.mxu0 0
        %1316 = vmatprep.subr.bf16.mxu0 0
        %1317 = vmatpush1.bf16.msra.mxu0 0
        %1318 = vmatprep.subr.bf16.mxu0 0
        %1319 = vmatpush1.bf16.msra.mxu0 0
        %1320 = vmatprep.subr.bf16.mxu0 0
        %1321 = vmatpush1.bf16.msra.mxu0 0
        %1322 = vmatprep.subr.bf16.mxu0 0
        %1323 = vmatpush1.bf16.msra.mxu0 0
        %1324 = vmatprep.subr.bf16.mxu0 0
        %1325 = vmatpush1.bf16.msra.mxu0 0
        %1326 = vmatprep.subr.bf16.mxu0 0
        %1327 = vmatpush1.bf16.msra.mxu0 0
        %1328 = vmatprep.subr.bf16.mxu0 0
        %1329 = vmatpush1.bf16.msra.mxu0 0
        %1330 = vmatprep.subr.bf16.mxu0 0
        %1331 = vmatpush1.bf16.msra.mxu0 0
        %1332 = vmatprep.subr.bf16.mxu0 0
        %1333 = vmatpush1.bf16.msra.mxu0 0
        %1334 = vmatprep.subr.bf16.mxu0 0
        %1335 = vmatpush1.bf16.msra.mxu0 0
        %1336 = vmatprep.subr.bf16.mxu0 0
        %1337 = vmatpush1.bf16.msra.mxu0 0
        %1338 = vmatprep.mubr.bf16.mxu0 0
        %1339 = vmatmul.mubr.bf16.gmra.mrb[0].mxu0 %v1304
        %v1340 = vpop.f32.mrb[0].mxu0
        %v1341 = vadd.f32 0.0, %v1340
        %v1342 = vpop.f32.mrb[0].mxu0
        %v1343 = vpop.f32.mrb[0].mxu0
        %v1344 = vpop.f32.mrb[0].mxu0
        %1345 = vdwg.mxu0
        %v1346 = vpack.c.bf16 %v1341, %v1341
        %1347 = vrot.lane.b32.xlu0 %v484, 64
        %v1348 = vpop.permute.xlu0 %1347
        %v1350 = vsel %vm438, %v1346, 0
        %v1353 = vsel %vm438, %v1348, 0
        %1355 = vmatprep.subr.bf16.mxu0 0
        %1356 = vmatpush1.bf16.xpose.msra.mxu0 %v1353
        %1357 = vmatprep.subr.bf16.mxu0 0
        %1358 = vmatpush1.bf16.xpose.msra.mxu0 0
        %1359 = vmatprep.subr.bf16.mxu0 0
        %1360 = vmatpush1.bf16.xpose.msra.mxu0 0
        %1361 = vmatprep.subr.bf16.mxu0 0
        %1362 = vmatpush1.bf16.xpose.msra.mxu0 0
        %1363 = vmatprep.subr.bf16.mxu0 0
        %1364 = vmatpush1.bf16.xpose.msra.mxu0 0
        %1365 = vmatprep.subr.bf16.mxu0 0
        %1366 = vmatpush1.bf16.xpose.msra.mxu0 0
        %1367 = vmatprep.subr.bf16.mxu0 0
        %1368 = vmatpush1.bf16.xpose.msra.mxu0 0
        %1369 = vmatprep.subr.bf16.mxu0 0
        %1370 = vmatpush1.bf16.xpose.msra.mxu0 0
        %1371 = vmatprep.subr.bf16.mxu0 0
        %1372 = vmatpush1.bf16.xpose.msra.mxu0 0
        %1373 = vmatprep.subr.bf16.mxu0 0
        %1374 = vmatpush1.bf16.xpose.msra.mxu0 0
        %1375 = vmatprep.subr.bf16.mxu0 0
        %1376 = vmatpush1.bf16.xpose.msra.mxu0 0
        %1377 = vmatprep.subr.bf16.mxu0 0
        %1378 = vmatpush1.bf16.xpose.msra.mxu0 0
        %1379 = vmatprep.subr.bf16.mxu0 0
        %1380 = vmatpush1.bf16.xpose.msra.mxu0 0
        %1381 = vmatprep.subr.bf16.mxu0 0
        %1382 = vmatpush1.bf16.xpose.msra.mxu0 0
        %1383 = vmatprep.subr.bf16.mxu0 0
        %1384 = vmatpush1.bf16.xpose.msra.mxu0 0
        %1385 = vmatprep.subr.bf16.mxu0 0
        %1386 = vmatpush1.bf16.xpose.msra.mxu0 0
        %1387 = vmatprep.mubr.bf16.mxu0 0
        %1388 = vmatmul.mubr.bf16.gmra.mrb[0].mxu0 %v1350
        %v1389 = vpop.f32.mrb[0].mxu0
        %v1390 = vadd.f32 0.0, %v1389
        %v1391 = vpop.f32.mrb[0].mxu0
        %v1392 = vpop.f32.mrb[0].mxu0
        %v1393 = vpop.f32.mrb[0].mxu0
        %1394 = vdwg.mxu0
        %v1395 = vsel %vm725, %v1390, -inf
        %1396 = vmax.xlane.f32.xlu0 %v1395
        %v1397 = vpop.xlane.xlu0 %1396
        %v1398 = vsub.f32 %v1390, %v1397
        %v1399 = vmul.f32 %v1398, 1.442695
        %v1400 = vpow.pop %v1399
        %v1401 = vsel %vm725, %v1400, 0.0
        %1402 = vadd.xlane.f32.xlu0 %v1401
        %v1403 = vpop.xlane.xlu0 %1402
        %v1404 = vrcp.pop %v1403
        %v1405 = vmul.f32 %v1400, %v1404
        %v1406 = vpack.c.bf16 %v1405, %v1405
        %1407 = vrot.lane.b32.xlu0 %v484, 32
        %v1408 = vpop.permute.xlu0 %1407
        %v1410 = vsel %vm725, %v1406, 0
        %v1413 = vsel %vm755, %v1408, 0
        %1415 = vmatprep.subr.bf16.mxu0 0
        %1416 = vmatpush1.bf16.msra.mxu0 %v1413
        %1417 = vmatprep.subr.bf16.mxu0 0
        %1418 = vmatpush1.bf16.msra.mxu0 0
        %1419 = vmatprep.subr.bf16.mxu0 0
        %1420 = vmatpush1.bf16.msra.mxu0 0
        %1421 = vmatprep.subr.bf16.mxu0 0
        %1422 = vmatpush1.bf16.msra.mxu0 0
        %1423 = vmatprep.subr.bf16.mxu0 0
        %1424 = vmatpush1.bf16.msra.mxu0 0
        %1425 = vmatprep.subr.bf16.mxu0 0
        %1426 = vmatpush1.bf16.msra.mxu0 0
        %1427 = vmatprep.subr.bf16.mxu0 0
        %1428 = vmatpush1.bf16.msra.mxu0 0
        %1429 = vmatprep.subr.bf16.mxu0 0
        %1430 = vmatpush1.bf16.msra.mxu0 0
        %1431 = vmatprep.subr.bf16.mxu0 0
        %1432 = vmatpush1.bf16.msra.mxu0 0
        %1433 = vmatprep.subr.bf16.mxu0 0
        %1434 = vmatpush1.bf16.msra.mxu0 0
        %1435 = vmatprep.subr.bf16.mxu0 0
        %1436 = vmatpush1.bf16.msra.mxu0 0
        %1437 = vmatprep.subr.bf16.mxu0 0
        %1438 = vmatpush1.bf16.msra.mxu0 0
        %1439 = vmatprep.subr.bf16.mxu0 0
        %1440 = vmatpush1.bf16.msra.mxu0 0
        %1441 = vmatprep.subr.bf16.mxu0 0
        %1442 = vmatpush1.bf16.msra.mxu0 0
        %1443 = vmatprep.subr.bf16.mxu0 0
        %1444 = vmatpush1.bf16.msra.mxu0 0
        %1445 = vmatprep.subr.bf16.mxu0 0
        %1446 = vmatpush1.bf16.msra.mxu0 0
        %1447 = vmatprep.mubr.bf16.mxu0 0
        %1448 = vmatmul.mubr.bf16.gmra.mrb[0].mxu0 %v1410
        %v1449 = vpop.f32.mrb[0].mxu0
        %v1450 = vadd.f32 0.0, %v1449
        %v1451 = vpop.f32.mrb[0].mxu0
        %v1452 = vpop.f32.mrb[0].mxu0
        %v1453 = vpop.f32.mrb[0].mxu0
        %1454 = vdwg.mxu0
        %1456 = vrot.lane.b32.xlu0 %v411, 32
        %v1457 = vpop.permute.xlu0 %1456
        %1460 = vrot.lane.b32.xlu0 %v412, 64
        %v1461 = vpop.permute.xlu0 %1460
        %1464 = vrot.lane.b32.xlu0 %v1285, 96
        %v1465 = vpop.permute.xlu0 %1464
        %1468 = vrot.lane.b32.xlu0 %v1283, 32
        %v1469 = vpop.permute.xlu0 %1468
        %1472 = vrot.lane.b32.xlu0 %v1450, 64
        %v1473 = vpop.permute.xlu0 %1472
        %v1475 = vsel %vm438, %v410, %v1457
        %vm1476 = vcmask 523264
        %v1477 = vsel %vm1476, %v1475, %v1461
        %vm1478 = vcmask 785408
        %v1479 = vsel %vm1478, %v1477, %v1465
        %v1480 = vsel %vm438, %v1284, %v1469
        %v1481 = vsel %vm1476, %v1480, %v1473
        %1482 = vst [vmem:[%s408] sm:$0xff] %v1479
        %1483 = vst.msk [vmem:[%s408 + $0x8] sm:$0xff] %vm1478, %v1481
        %s1484 = sand.u32 %s199, 1
        %s1485 = scalar_lea.sflag [#allocation4], %s1484
        %s1486 = sand.u32 %s199, 1
        %s1487 = smul.addr %s1486, 16
        %s1488 = scalar_lea.vmem [#allocation13], %s1487
        // Predicated region
        $region73: #{tpu_custom_call.1} parent=47 // pred_check
          %p1489 = pneg %p209
        $region74: #{tpu_custom_call.1} parent=47 // pred_check_branch
          %1491 = sbr.rel (%p1489) target = $region76
        $region75: #{tpu_custom_call.1} parent=47 // pred_region
          %s1493 = ssub.s32 256, 256
          %1494 = vsyncadd %s1485, %s1493
          %s1495 = smul.addr %s29, 2
          %s1496 = smul.addr %s1495, 128
          %s1497 = scalar_lea.hbm %s7, %s1496
          %s1499 = sshll.u32 %s1488, 4
          %s1500 = int_to_ptr.vmem [resolvable:$true] %s1499
          %1502 = dma.vmem_to_hbm [thread:$0]  %s1500, 256, %s1497, %s1485
        $region76: #{tpu_custom_call.1} parent=47 // pred_fallthru
          _
      $region48: #{tpu_custom_call.1} parent=5 // pred_fallthru
        _
      %p1503 = scmp.le.s32.totalorder 2, %s24
      // Predicated region
      $region77: #{tpu_custom_call.1} parent=5 // pred_check
        %p1504 = pneg %p1503
      $region78: #{tpu_custom_call.1} parent=5 // pred_check_branch
        %1506 = sbr.rel (%p1504) target = $region80
      $region79: #{tpu_custom_call.1} parent=5 // pred_region
        %s1507 = ssub.s32 %s24, 2
        // Predicated region
        $region81: #{tpu_custom_call.1} parent=79 // pred_check
          %p1508 = pneg %p215
        $region82: #{tpu_custom_call.1} parent=79 // pred_check_branch
          %1510 = sbr.rel (%p1508) target = $region84
        $region83: #{tpu_custom_call.1} parent=79 // pred_region
          %s1511 = sand.u32 %s200, 1
          %s1512 = scalar_lea.sflag [#allocation4], %s1511
          %s1513 = sand.u32 %s200, 1
          %s1514 = smul.addr %s1513, 16
          %s1515 = scalar_lea.vmem [#allocation13], %s1514
          %1516 = dma.done %s1512, 256
        $region84: #{tpu_custom_call.1} parent=79 // pred_fallthru
          _
      $region80: #{tpu_custom_call.1} parent=5 // pred_fallthru
        _
    $region6: #{tpu_custom_call.1} parent=1 // loop_footer
      %s28 = sadd.s32 1, %s24
    $region7: #{tpu_custom_call.1} parent=1 // loop_footer_branch
      %23 = sbr.rel target = $region3
    $region8: #{tpu_custom_call.1} parent=1 // loop_exit
      _
    %1517 = vsyncpa [#allocation3], 1
    %s1518 = scalar_lea.sflag [#allocation3], 1
    %1519 = vsyncpa %s1518, 1
    %1520 = vsyncpa [#allocation6], 1
    %s1521 = scalar_lea.sflag [#allocation6], 1
    %1522 = vsyncpa %s1521, 1
    %1523 = vsyncpa [#allocation9], 1
    %1524 = vsyncpa [#allocation12], 1
    %1525 = vsyncpa [#allocation4], 1
    %s1526 = scalar_lea.sflag [#allocation4], 1
    %1527 = vsyncpa %s1526, 1

</llo_original>
